<compile_context>
chip_gen: v5e
topology: v5e:2x2
jax: 0.10.0
libtpu: 0.0.40
codegen_flags: <defaults>
</compile_context>

<pallas_src>
import jax
import jax.numpy as jnp
from jax.experimental import pallas as pl
from jax.experimental.pallas import tpu as pltpu

# ---------------- small BertConfig-like hyper-parameters ----------------
VOCAB_SIZE = 100
MAX_POS = 16
TYPE_VOCAB = 2
HIDDEN = 32
NUM_HEADS = 2
HEAD_DIM = HIDDEN // NUM_HEADS
INTERMEDIATE = 64
NUM_LAYERS = 2
NUM_LABELS = 3
LN_EPS = 1e-12
LANE_PAD = 128  # lane-dense output width for the classifier store

BATCH = 2
SEQ = 8


# ---------------- fused Pallas kernel ----------------
def _bert_fused_kernel(
    x_ref, mask_ref,
    emb_g_ref, emb_b_ref,
    qkv_w_ref, qkv_b_ref,
    ao_w_ref, ao_b_ref,
    ln1_g_ref, ln1_b_ref,
    ff1_w_ref, ff1_b_ref,
    ff2_w_ref, ff2_b_ref,
    ln2_g_ref, ln2_b_ref,
    pool_w_ref, pool_b_ref,
    cls_w_ref, cls_b_ref,
    out_ref,
    ctx_ref,  # VMEM scratch (B*S, HIDDEN) for the per-head context assembly
):
    def layer_norm(v, g, b):
        v = v.astype(jnp.float32)
        mean = jnp.mean(v, axis=-1, keepdims=True)
        cent = v - mean
        var = jnp.mean(cent * cent, axis=-1, keepdims=True)
        return cent * jax.lax.rsqrt(var + LN_EPS) * g + b

    scale = 1.0 / float(HEAD_DIM) ** 0.5
    inv_sqrt2 = 0.7071067811865476

    # --- BertEmbeddings.LayerNorm (sum of embeddings comes in pre-computed) ---
    x = layer_norm(x_ref[...], emb_g_ref[...], emb_b_ref[...])
    mask = mask_ref[...]  # (B, S) additive mask: 0 keep, -10000 masked

    # --- BertEncoder: NUM_LAYERS fully fused layers, all weights VMEM-resident ---
    for l in range(NUM_LAYERS):
        # fused Q/K/V projection: one MXU pass, (B*S, 3*HIDDEN)
        qkv = jnp.dot(x, qkv_w_ref[l], preferred_element_type=jnp.float32) + qkv_b_ref[l]
        q = qkv[:, 0 * HIDDEN:1 * HIDDEN]
        k = qkv[:, 1 * HIDDEN:2 * HIDDEN]
        v = qkv[:, 2 * HIDDEN:3 * HIDDEN]

        # attention: heads are static 16-lane column slices of the [B*S, HIDDEN] slab
        for b in range(BATCH):
            rows = slice(b * SEQ, (b + 1) * SEQ)
            m_b = mask[b:b + 1, :]  # (1, S), broadcasts over query rows
            for h in range(NUM_HEADS):
                cols = slice(h * HEAD_DIM, (h + 1) * HEAD_DIM)
                qh = q[rows, cols]  # (S, Dh)
                kh = k[rows, cols]
                vh = v[rows, cols]
                s = jax.lax.dot_general(
                    qh, kh, (((1,), (1,)), ((), ())),
                    preferred_element_type=jnp.float32,
                ) * scale
                s = s + m_b
                s = s - jnp.max(s, axis=-1, keepdims=True)
                p = jnp.exp(s)
                p = p * pl.reciprocal(jnp.sum(p, axis=-1, keepdims=True), approx=True)
                ctx_ref[rows, cols] = jnp.dot(p, vh, preferred_element_type=jnp.float32)

        ctx = ctx_ref[...]
        attn_out = jnp.dot(ctx, ao_w_ref[l], preferred_element_type=jnp.float32) + ao_b_ref[l]
        # fused residual + LayerNorm
        x = layer_norm(x + attn_out, ln1_g_ref[l], ln1_b_ref[l])

        # feed-forward, exact (erf) GELU as in HF BERT default
        ff = jnp.dot(x, ff1_w_ref[l], preferred_element_type=jnp.float32) + ff1_b_ref[l]
        ff = 0.5 * ff * (1.0 + jax.lax.erf(ff * inv_sqrt2))
        ff = jnp.dot(ff, ff2_w_ref[l], preferred_element_type=jnp.float32) + ff2_b_ref[l]
        x = layer_norm(x + ff, ln2_g_ref[l], ln2_b_ref[l])

    # --- BertPooler + classifier ---
    # Pooler/classifier are cheap, so compute them for every token row (lane-dense, no
    # in-kernel row gather); the wrapper slices out token 0 of each sequence.
    pooled = jnp.tanh(
        jnp.dot(x, pool_w_ref[...], preferred_element_type=jnp.float32) + pool_b_ref[...]
    )
    out_ref[...] = (
        jnp.dot(pooled, cls_w_ref[...], preferred_element_type=jnp.float32) + cls_b_ref[...]
    )


# ---------------- wrapper ----------------
def _full_spec(a):
    nd = a.ndim
    return pl.BlockSpec(a.shape, lambda i, nd=nd: (0,) * nd)


def inner_bert_classification_forward(params, input_ids, attention_mask):
    """Equivalent of innerBertClassification.forward(input_ids, attention_mask) -> logits."""
    B, S = input_ids.shape

    # --- embedding gathers (glue) ---
    emb = (
        jnp.take(params["word_emb"], input_ids, axis=0)
        + params["pos_emb"][:S][None, :, :]
        + params["type_emb"][0][None, None, :]   # token_type_ids default to 0 (HF behavior)
    )
    x = emb.reshape(B * S, HIDDEN).astype(jnp.float32)

    # extended attention mask: 0 for keep, -10000 for masked (BERT convention)
    ext_mask = (1.0 - attention_mask.astype(jnp.float32)) * -10000.0  # (B, S)

    inputs = [
        x, ext_mask,
        params["emb_ln_g"], params["emb_ln_b"],
        params["qkv_w"], params["qkv_b"],
        params["ao_w"], params["ao_b"],
        params["ln1_g"], params["ln1_b"],
        params["ff1_w"], params["ff1_b"],
        params["ff2_w"], params["ff2_b"],
        params["ln2_g"], params["ln2_b"],
        params["pool_w"], params["pool_b"],
        params["cls_w_pad"], params["cls_b_pad"],
    ]

    out = pl.pallas_call(
        _bert_fused_kernel,
        out_shape=jax.ShapeDtypeStruct((B * S, LANE_PAD), jnp.float32),
        grid=(1,),
        in_specs=[_full_spec(a) for a in inputs],
        out_specs=pl.BlockSpec((B * S, LANE_PAD), lambda i: (0, 0)),
        scratch_shapes=[pltpu.VMEM((B * S, HIDDEN), jnp.float32)],
        compiler_params=pltpu.CompilerParams(
            dimension_semantics=("arbitrary",),
        ),
    )(*inputs)

    # token 0 of each sequence, first NUM_LABELS lanes of the padded classifier output
    logits = out.reshape(B, S, LANE_PAD)[:, 0, :NUM_LABELS]
    return logits


# ---------------- parameter init (deterministic, BERT-style, pre-fused/stacked) ----------------
def init_params(key):
    keys = iter(jax.random.split(key, 8 + NUM_LAYERS * 8))

    def nrm(shape, std=0.02):
        return (std * jax.random.normal(next(keys), shape)).astype(jnp.float32)

    params = {
        "word_emb": nrm((VOCAB_SIZE, HIDDEN)),
        "pos_emb": nrm((MAX_POS, HIDDEN)),
        "type_emb": nrm((TYPE_VOCAB, HIDDEN)),
        "emb_ln_g": jnp.ones((1, HIDDEN), jnp.float32),
        "emb_ln_b": jnp.zeros((1, HIDDEN), jnp.float32),
    }

    qkv_w, ao_w, ff1_w, ff2_w = [], [], [], []
    for _ in range(NUM_LAYERS):
        # fused Q/K/V weight: concat along the output dim -> (HIDDEN, 3*HIDDEN)
        qkv_w.append(jnp.concatenate(
            [nrm((HIDDEN, HIDDEN)) for _ in range(3)], axis=1))
        ao_w.append(nrm((HIDDEN, HIDDEN)))
        ff1_w.append(nrm((HIDDEN, INTERMEDIATE)))
        ff2_w.append(nrm((INTERMEDIATE, HIDDEN)))

    params.update({
        "qkv_w": jnp.stack(qkv_w),
        "qkv_b": jnp.zeros((NUM_LAYERS, 1, 3 * HIDDEN), jnp.float32),
        "ao_w": jnp.stack(ao_w),
        "ao_b": jnp.zeros((NUM_LAYERS, 1, HIDDEN), jnp.float32),
        "ln1_g": jnp.ones((NUM_LAYERS, 1, HIDDEN), jnp.float32),
        "ln1_b": jnp.zeros((NUM_LAYERS, 1, HIDDEN), jnp.float32),
        "ff1_w": jnp.stack(ff1_w),
        "ff1_b": jnp.zeros((NUM_LAYERS, 1, INTERMEDIATE), jnp.float32),
        "ff2_w": jnp.stack(ff2_w),
        "ff2_b": jnp.zeros((NUM_LAYERS, 1, HIDDEN), jnp.float32),
        "ln2_g": jnp.ones((NUM_LAYERS, 1, HIDDEN), jnp.float32),
        "ln2_b": jnp.zeros((NUM_LAYERS, 1, HIDDEN), jnp.float32),
        "pool_w": nrm((HIDDEN, HIDDEN)),
        "pool_b": jnp.zeros((1, HIDDEN), jnp.float32),
        # classifier weight lane-padded from NUM_LABELS=3 to 128 columns (zeros beyond 3)
        "cls_w_pad": jnp.pad(nrm((HIDDEN, NUM_LABELS)),
                             ((0, 0), (0, LANE_PAD - NUM_LABELS))),
        "cls_b_pad": jnp.zeros((1, LANE_PAD), jnp.float32),
    })
    return params


# ---------------- main ----------------
if __name__ == "__main__":
    root = jax.random.PRNGKey(0)
    k_param, k_ids = jax.random.split(root)

    params = init_params(k_param)

    input_ids = jax.random.randint(k_ids, (BATCH, SEQ), 0, VOCAB_SIZE, dtype=jnp.int32)
    attention_mask = jnp.ones((BATCH, SEQ), jnp.int32)
    attention_mask = attention_mask.at[1, SEQ - 2:].set(0)  # pad tail of 2nd sample

    fwd = jax.jit(inner_bert_classification_forward)
    logits = fwd(params, input_ids, attention_mask)
    logits = jax.block_until_ready(logits)

    assert logits.shape == (BATCH, NUM_LABELS)
    assert bool(jnp.all(jnp.isfinite(logits)))
    print("KERNEL_OK")
</pallas_src>

<mosaic_0001>
module attributes {stable_mosaic.version = 11 : i64} {
  func.func @_bert_fused_kernel(%arg0: i32, %arg1: memref<16x32xf32, #tpu.memory_space<vmem>>, %arg2: memref<2x8xf32, #tpu.memory_space<vmem>>, %arg3: memref<1x32xf32, #tpu.memory_space<vmem>>, %arg4: memref<1x32xf32, #tpu.memory_space<vmem>>, %arg5: memref<2x32x96xf32, #tpu.memory_space<vmem>>, %arg6: memref<2x1x96xf32, #tpu.memory_space<vmem>>, %arg7: memref<2x32x32xf32, #tpu.memory_space<vmem>>, %arg8: memref<2x1x32xf32, #tpu.memory_space<vmem>>, %arg9: memref<2x1x32xf32, #tpu.memory_space<vmem>>, %arg10: memref<2x1x32xf32, #tpu.memory_space<vmem>>, %arg11: memref<2x32x64xf32, #tpu.memory_space<vmem>>, %arg12: memref<2x1x64xf32, #tpu.memory_space<vmem>>, %arg13: memref<2x64x32xf32, #tpu.memory_space<vmem>>, %arg14: memref<2x1x32xf32, #tpu.memory_space<vmem>>, %arg15: memref<2x1x32xf32, #tpu.memory_space<vmem>>, %arg16: memref<2x1x32xf32, #tpu.memory_space<vmem>>, %arg17: memref<32x32xf32, #tpu.memory_space<vmem>>, %arg18: memref<1x32xf32, #tpu.memory_space<vmem>>, %arg19: memref<32x128xf32, #tpu.memory_space<vmem>>, %arg20: memref<1x128xf32, #tpu.memory_space<vmem>>, %arg21: memref<16x128xf32, #tpu.memory_space<vmem>>, %arg22: memref<16x32xf32, #tpu.memory_space<vmem>>) attributes {dimension_semantics = [#tpu.dimension_semantics<arbitrary>], iteration_bounds = array<i64: 1>, scalar_prefetch = 0 : i64, scratch_operands = 1 : i64, tpu.core_type = #tpu.core_type<tc>, window_params = [{pipeline_mode = #tpu.pipeline_mode<synchronous>, transform_indices = @transform_0, window_bounds = array<i64: 16, 32>}, {pipeline_mode = #tpu.pipeline_mode<synchronous>, transform_indices = @transform_1, window_bounds = array<i64: 2, 8>}, {pipeline_mode = #tpu.pipeline_mode<synchronous>, transform_indices = @transform_2, window_bounds = array<i64: 1, 32>}, {pipeline_mode = #tpu.pipeline_mode<synchronous>, transform_indices = @transform_3, window_bounds = array<i64: 1, 32>}, {pipeline_mode = #tpu.pipeline_mode<synchronous>, transform_indices = @transform_4, window_bounds = array<i64: 2, 32, 96>}, {pipeline_mode = #tpu.pipeline_mode<synchronous>, transform_indices = @transform_5, window_bounds = array<i64: 2, 1, 96>}, {pipeline_mode = #tpu.pipeline_mode<synchronous>, transform_indices = @transform_6, window_bounds = array<i64: 2, 32, 32>}, {pipeline_mode = #tpu.pipeline_mode<synchronous>, transform_indices = @transform_7, window_bounds = array<i64: 2, 1, 32>}, {pipeline_mode = #tpu.pipeline_mode<synchronous>, transform_indices = @transform_8, window_bounds = array<i64: 2, 1, 32>}, {pipeline_mode = #tpu.pipeline_mode<synchronous>, transform_indices = @transform_9, window_bounds = array<i64: 2, 1, 32>}, {pipeline_mode = #tpu.pipeline_mode<synchronous>, transform_indices = @transform_10, window_bounds = array<i64: 2, 32, 64>}, {pipeline_mode = #tpu.pipeline_mode<synchronous>, transform_indices = @transform_11, window_bounds = array<i64: 2, 1, 64>}, {pipeline_mode = #tpu.pipeline_mode<synchronous>, transform_indices = @transform_12, window_bounds = array<i64: 2, 64, 32>}, {pipeline_mode = #tpu.pipeline_mode<synchronous>, transform_indices = @transform_13, window_bounds = array<i64: 2, 1, 32>}, {pipeline_mode = #tpu.pipeline_mode<synchronous>, transform_indices = @transform_14, window_bounds = array<i64: 2, 1, 32>}, {pipeline_mode = #tpu.pipeline_mode<synchronous>, transform_indices = @transform_15, window_bounds = array<i64: 2, 1, 32>}, {pipeline_mode = #tpu.pipeline_mode<synchronous>, transform_indices = @transform_16, window_bounds = array<i64: 32, 32>}, {pipeline_mode = #tpu.pipeline_mode<synchronous>, transform_indices = @transform_17, window_bounds = array<i64: 1, 32>}, {pipeline_mode = #tpu.pipeline_mode<synchronous>, transform_indices = @transform_18, window_bounds = array<i64: 32, 128>}, {pipeline_mode = #tpu.pipeline_mode<synchronous>, transform_indices = @transform_19, window_bounds = array<i64: 1, 128>}, {pipeline_mode = #tpu.pipeline_mode<synchronous>, transform_indices = @transform_20, window_bounds = array<i64: 16, 128>}]} {
    %c0 = arith.constant 0 : index
    %c0_0 = arith.constant 0 : index
    %0 = vector.load %arg1[%c0, %c0_0] : memref<16x32xf32, #tpu.memory_space<vmem>>, vector<16x32xf32>
    %c0_1 = arith.constant 0 : index
    %c0_2 = arith.constant 0 : index
    %1 = vector.load %arg3[%c0_1, %c0_2] : memref<1x32xf32, #tpu.memory_space<vmem>>, vector<1x32xf32>
    %c0_3 = arith.constant 0 : index
    %c0_4 = arith.constant 0 : index
    %2 = vector.load %arg4[%c0_3, %c0_4] : memref<1x32xf32, #tpu.memory_space<vmem>>, vector<1x32xf32>
    %cst = arith.constant dense<0.000000e+00> : vector<16xf32>
    %3 = vector.multi_reduction <add>, %0, %cst [1] : vector<16x32xf32> to vector<16xf32>
    %4 = vector.shape_cast %3 : vector<16xf32> to vector<16x1xf32>
    %cst_5 = arith.constant 3.200000e+01 : f32
    %5 = vector.broadcast %cst_5 : f32 to vector<16x1xf32>
    %6 = arith.divf %4, %5 : vector<16x1xf32>
    %7 = vector.broadcast %6 : vector<16x1xf32> to vector<16x32xf32>
    %8 = arith.subf %0, %7 : vector<16x32xf32>
    %9 = arith.mulf %8, %8 : vector<16x32xf32>
    %cst_6 = arith.constant dense<0.000000e+00> : vector<16xf32>
    %10 = vector.multi_reduction <add>, %9, %cst_6 [1] : vector<16x32xf32> to vector<16xf32>
    %11 = vector.shape_cast %10 : vector<16xf32> to vector<16x1xf32>
    %cst_7 = arith.constant 3.200000e+01 : f32
    %12 = vector.broadcast %cst_7 : f32 to vector<16x1xf32>
    %13 = arith.divf %11, %12 : vector<16x1xf32>
    %cst_8 = arith.constant 9.99999996E-13 : f32
    %14 = vector.broadcast %cst_8 : f32 to vector<16x1xf32>
    %15 = arith.addf %13, %14 : vector<16x1xf32>
    %16 = math.rsqrt %15 : vector<16x1xf32>
    %17 = vector.broadcast %16 : vector<16x1xf32> to vector<16x32xf32>
    %18 = arith.mulf %8, %17 : vector<16x32xf32>
    %19 = vector.broadcast %1 : vector<1x32xf32> to vector<16x32xf32>
    %20 = arith.mulf %18, %19 : vector<16x32xf32>
    %21 = vector.broadcast %2 : vector<1x32xf32> to vector<16x32xf32>
    %22 = arith.addf %20, %21 : vector<16x32xf32>
    %c0_9 = arith.constant 0 : index
    %c0_10 = arith.constant 0 : index
    %23 = vector.load %arg2[%c0_9, %c0_10] : memref<2x8xf32, #tpu.memory_space<vmem>>, vector<2x8xf32>
    %c0_11 = arith.constant 0 : index
    %c0_12 = arith.constant 0 : index
    %c0_13 = arith.constant 0 : index
    %24 = vector.load %arg5[%c0_11, %c0_12, %c0_13] : memref<2x32x96xf32, #tpu.memory_space<vmem>>, vector<1x32x96xf32>
    %25 = vector.shape_cast %24 : vector<1x32x96xf32> to vector<32x96xf32>
    %cst_14 = arith.constant dense<0.000000e+00> : vector<16x96xf32>
    %26 = tpu.matmul %22, %25, %cst_14 {dimension_numbers = #tpu.dot_dimension_numbers<[1], [0], [0], [1], [0, 0, 1, 1], [], []>} : vector<16x32xf32>, vector<32x96xf32>, vector<16x96xf32> -> vector<16x96xf32>
    %c0_15 = arith.constant 0 : index
    %c0_16 = arith.constant 0 : index
    %c0_17 = arith.constant 0 : index
    %27 = vector.load %arg6[%c0_15, %c0_16, %c0_17] : memref<2x1x96xf32, #tpu.memory_space<vmem>>, vector<1x1x96xf32>
    %28 = vector.shape_cast %27 : vector<1x1x96xf32> to vector<1x96xf32>
    %29 = vector.broadcast %28 : vector<1x96xf32> to vector<16x96xf32>
    %30 = arith.addf %26, %29 : vector<16x96xf32>
    %31 = vector.extract_strided_slice %30 {offsets = [0, 0], sizes = [16, 32], strides = [1, 1]} : vector<16x96xf32> to vector<16x32xf32>
    %32 = vector.extract_strided_slice %30 {offsets = [0, 32], sizes = [16, 32], strides = [1, 1]} : vector<16x96xf32> to vector<16x32xf32>
    %33 = vector.extract_strided_slice %30 {offsets = [0, 64], sizes = [16, 32], strides = [1, 1]} : vector<16x96xf32> to vector<16x32xf32>
    %34 = vector.extract_strided_slice %23 {offsets = [0, 0], sizes = [1, 8], strides = [1, 1]} : vector<2x8xf32> to vector<1x8xf32>
    %35 = vector.extract_strided_slice %31 {offsets = [0, 0], sizes = [8, 16], strides = [1, 1]} : vector<16x32xf32> to vector<8x16xf32>
    %36 = vector.extract_strided_slice %32 {offsets = [0, 0], sizes = [8, 16], strides = [1, 1]} : vector<16x32xf32> to vector<8x16xf32>
    %37 = vector.extract_strided_slice %33 {offsets = [0, 0], sizes = [8, 16], strides = [1, 1]} : vector<16x32xf32> to vector<8x16xf32>
    %cst_18 = arith.constant dense<0.000000e+00> : vector<8x8xf32>
    %38 = tpu.matmul %35, %36, %cst_18 {dimension_numbers = #tpu.dot_dimension_numbers<[1], [1], [0], [0], [0, 0, 1, 0], [], []>} : vector<8x16xf32>, vector<8x16xf32>, vector<8x8xf32> -> vector<8x8xf32>
    %cst_19 = arith.constant 2.500000e-01 : f32
    %39 = vector.broadcast %cst_19 : f32 to vector<8x8xf32>
    %40 = arith.mulf %38, %39 : vector<8x8xf32>
    %41 = vector.broadcast %34 : vector<1x8xf32> to vector<8x8xf32>
    %42 = arith.addf %40, %41 : vector<8x8xf32>
    %cst_20 = arith.constant dense<0xFF800000> : vector<8xf32>
    %43 = vector.multi_reduction <maximumf>, %42, %cst_20 [1] : vector<8x8xf32> to vector<8xf32>
    %44 = vector.shape_cast %43 : vector<8xf32> to vector<8x1xf32>
    %45 = vector.broadcast %44 : vector<8x1xf32> to vector<8x8xf32>
    %46 = arith.subf %42, %45 : vector<8x8xf32>
    %47 = math.exp %46 : vector<8x8xf32>
    %cst_21 = arith.constant dense<0.000000e+00> : vector<8xf32>
    %48 = vector.multi_reduction <add>, %47, %cst_21 [1] : vector<8x8xf32> to vector<8xf32>
    %49 = vector.shape_cast %48 : vector<8xf32> to vector<8x1xf32>
    %50 = tpu.reciprocal %49 {approx = true} : vector<8x1xf32> -> vector<8x1xf32>
    %51 = vector.broadcast %50 : vector<8x1xf32> to vector<8x8xf32>
    %52 = arith.mulf %47, %51 : vector<8x8xf32>
    %cst_22 = arith.constant dense<0.000000e+00> : vector<8x16xf32>
    %53 = tpu.matmul %52, %37, %cst_22 {dimension_numbers = #tpu.dot_dimension_numbers<[1], [0], [0], [1], [0, 0, 1, 1], [], []>} : vector<8x8xf32>, vector<8x16xf32>, vector<8x16xf32> -> vector<8x16xf32>
    %c0_23 = arith.constant 0 : index
    %c0_24 = arith.constant 0 : index
    %54 = vector.load %arg22[%c0_23, %c0_24] : memref<16x32xf32, #tpu.memory_space<vmem>>, vector<8x16xf32>
    tpu.vector_store %arg22[%c0_23, %c0_24], %53 {strides = array<i32>} : memref<16x32xf32, #tpu.memory_space<vmem>>, vector<8x16xf32>,
    %55 = vector.extract_strided_slice %31 {offsets = [0, 16], sizes = [8, 16], strides = [1, 1]} : vector<16x32xf32> to vector<8x16xf32>
    %56 = vector.extract_strided_slice %32 {offsets = [0, 16], sizes = [8, 16], strides = [1, 1]} : vector<16x32xf32> to vector<8x16xf32>
    %57 = vector.extract_strided_slice %33 {offsets = [0, 16], sizes = [8, 16], strides = [1, 1]} : vector<16x32xf32> to vector<8x16xf32>
    %cst_25 = arith.constant dense<0.000000e+00> : vector<8x8xf32>
    %58 = tpu.matmul %55, %56, %cst_25 {dimension_numbers = #tpu.dot_dimension_numbers<[1], [1], [0], [0], [0, 0, 1, 0], [], []>} : vector<8x16xf32>, vector<8x16xf32>, vector<8x8xf32> -> vector<8x8xf32>
    %cst_26 = arith.constant 2.500000e-01 : f32
    %59 = vector.broadcast %cst_26 : f32 to vector<8x8xf32>
    %60 = arith.mulf %58, %59 : vector<8x8xf32>
    %61 = vector.broadcast %34 : vector<1x8xf32> to vector<8x8xf32>
    %62 = arith.addf %60, %61 : vector<8x8xf32>
    %cst_27 = arith.constant dense<0xFF800000> : vector<8xf32>
    %63 = vector.multi_reduction <maximumf>, %62, %cst_27 [1] : vector<8x8xf32> to vector<8xf32>
    %64 = vector.shape_cast %63 : vector<8xf32> to vector<8x1xf32>
    %65 = vector.broadcast %64 : vector<8x1xf32> to vector<8x8xf32>
    %66 = arith.subf %62, %65 : vector<8x8xf32>
    %67 = math.exp %66 : vector<8x8xf32>
    %cst_28 = arith.constant dense<0.000000e+00> : vector<8xf32>
    %68 = vector.multi_reduction <add>, %67, %cst_28 [1] : vector<8x8xf32> to vector<8xf32>
    %69 = vector.shape_cast %68 : vector<8xf32> to vector<8x1xf32>
    %70 = tpu.reciprocal %69 {approx = true} : vector<8x1xf32> -> vector<8x1xf32>
    %71 = vector.broadcast %70 : vector<8x1xf32> to vector<8x8xf32>
    %72 = arith.mulf %67, %71 : vector<8x8xf32>
    %cst_29 = arith.constant dense<0.000000e+00> : vector<8x16xf32>
    %73 = tpu.matmul %72, %57, %cst_29 {dimension_numbers = #tpu.dot_dimension_numbers<[1], [0], [0], [1], [0, 0, 1, 1], [], []>} : vector<8x8xf32>, vector<8x16xf32>, vector<8x16xf32> -> vector<8x16xf32>
    %c0_30 = arith.constant 0 : index
    %c16 = arith.constant 16 : index
    %74 = vector.load %arg22[%c0_30, %c16] : memref<16x32xf32, #tpu.memory_space<vmem>>, vector<8x16xf32>
    tpu.vector_store %arg22[%c0_30, %c16], %73 {strides = array<i32>} : memref<16x32xf32, #tpu.memory_space<vmem>>, vector<8x16xf32>,
    %75 = vector.extract_strided_slice %23 {offsets = [1, 0], sizes = [1, 8], strides = [1, 1]} : vector<2x8xf32> to vector<1x8xf32>
    %76 = vector.extract_strided_slice %31 {offsets = [8, 0], sizes = [8, 16], strides = [1, 1]} : vector<16x32xf32> to vector<8x16xf32>
    %77 = vector.extract_strided_slice %32 {offsets = [8, 0], sizes = [8, 16], strides = [1, 1]} : vector<16x32xf32> to vector<8x16xf32>
    %78 = vector.extract_strided_slice %33 {offsets = [8, 0], sizes = [8, 16], strides = [1, 1]} : vector<16x32xf32> to vector<8x16xf32>
    %cst_31 = arith.constant dense<0.000000e+00> : vector<8x8xf32>
    %79 = tpu.matmul %76, %77, %cst_31 {dimension_numbers = #tpu.dot_dimension_numbers<[1], [1], [0], [0], [0, 0, 1, 0], [], []>} : vector<8x16xf32>, vector<8x16xf32>, vector<8x8xf32> -> vector<8x8xf32>
    %cst_32 = arith.constant 2.500000e-01 : f32
    %80 = vector.broadcast %cst_32 : f32 to vector<8x8xf32>
    %81 = arith.mulf %79, %80 : vector<8x8xf32>
    %82 = vector.broadcast %75 : vector<1x8xf32> to vector<8x8xf32>
    %83 = arith.addf %81, %82 : vector<8x8xf32>
    %cst_33 = arith.constant dense<0xFF800000> : vector<8xf32>
    %84 = vector.multi_reduction <maximumf>, %83, %cst_33 [1] : vector<8x8xf32> to vector<8xf32>
    %85 = vector.shape_cast %84 : vector<8xf32> to vector<8x1xf32>
    %86 = vector.broadcast %85 : vector<8x1xf32> to vector<8x8xf32>
    %87 = arith.subf %83, %86 : vector<8x8xf32>
    %88 = math.exp %87 : vector<8x8xf32>
    %cst_34 = arith.constant dense<0.000000e+00> : vector<8xf32>
    %89 = vector.multi_reduction <add>, %88, %cst_34 [1] : vector<8x8xf32> to vector<8xf32>
    %90 = vector.shape_cast %89 : vector<8xf32> to vector<8x1xf32>
    %91 = tpu.reciprocal %90 {approx = true} : vector<8x1xf32> -> vector<8x1xf32>
    %92 = vector.broadcast %91 : vector<8x1xf32> to vector<8x8xf32>
    %93 = arith.mulf %88, %92 : vector<8x8xf32>
    %cst_35 = arith.constant dense<0.000000e+00> : vector<8x16xf32>
    %94 = tpu.matmul %93, %78, %cst_35 {dimension_numbers = #tpu.dot_dimension_numbers<[1], [0], [0], [1], [0, 0, 1, 1], [], []>} : vector<8x8xf32>, vector<8x16xf32>, vector<8x16xf32> -> vector<8x16xf32>
    %c8 = arith.constant 8 : index
    %c0_36 = arith.constant 0 : index
    %95 = vector.load %arg22[%c8, %c0_36] : memref<16x32xf32, #tpu.memory_space<vmem>>, vector<8x16xf32>
    tpu.vector_store %arg22[%c8, %c0_36], %94 {strides = array<i32>} : memref<16x32xf32, #tpu.memory_space<vmem>>, vector<8x16xf32>,
    %96 = vector.extract_strided_slice %31 {offsets = [8, 16], sizes = [8, 16], strides = [1, 1]} : vector<16x32xf32> to vector<8x16xf32>
    %97 = vector.extract_strided_slice %32 {offsets = [8, 16], sizes = [8, 16], strides = [1, 1]} : vector<16x32xf32> to vector<8x16xf32>
    %98 = vector.extract_strided_slice %33 {offsets = [8, 16], sizes = [8, 16], strides = [1, 1]} : vector<16x32xf32> to vector<8x16xf32>
    %cst_37 = arith.constant dense<0.000000e+00> : vector<8x8xf32>
    %99 = tpu.matmul %96, %97, %cst_37 {dimension_numbers = #tpu.dot_dimension_numbers<[1], [1], [0], [0], [0, 0, 1, 0], [], []>} : vector<8x16xf32>, vector<8x16xf32>, vector<8x8xf32> -> vector<8x8xf32>
    %cst_38 = arith.constant 2.500000e-01 : f32
    %100 = vector.broadcast %cst_38 : f32 to vector<8x8xf32>
    %101 = arith.mulf %99, %100 : vector<8x8xf32>
    %102 = vector.broadcast %75 : vector<1x8xf32> to vector<8x8xf32>
    %103 = arith.addf %101, %102 : vector<8x8xf32>
    %cst_39 = arith.constant dense<0xFF800000> : vector<8xf32>
    %104 = vector.multi_reduction <maximumf>, %103, %cst_39 [1] : vector<8x8xf32> to vector<8xf32>
    %105 = vector.shape_cast %104 : vector<8xf32> to vector<8x1xf32>
    %106 = vector.broadcast %105 : vector<8x1xf32> to vector<8x8xf32>
    %107 = arith.subf %103, %106 : vector<8x8xf32>
    %108 = math.exp %107 : vector<8x8xf32>
    %cst_40 = arith.constant dense<0.000000e+00> : vector<8xf32>
    %109 = vector.multi_reduction <add>, %108, %cst_40 [1] : vector<8x8xf32> to vector<8xf32>
    %110 = vector.shape_cast %109 : vector<8xf32> to vector<8x1xf32>
    %111 = tpu.reciprocal %110 {approx = true} : vector<8x1xf32> -> vector<8x1xf32>
    %112 = vector.broadcast %111 : vector<8x1xf32> to vector<8x8xf32>
    %113 = arith.mulf %108, %112 : vector<8x8xf32>
    %cst_41 = arith.constant dense<0.000000e+00> : vector<8x16xf32>
    %114 = tpu.matmul %113, %98, %cst_41 {dimension_numbers = #tpu.dot_dimension_numbers<[1], [0], [0], [1], [0, 0, 1, 1], [], []>} : vector<8x8xf32>, vector<8x16xf32>, vector<8x16xf32> -> vector<8x16xf32>
    %c8_42 = arith.constant 8 : index
    %c16_43 = arith.constant 16 : index
    %115 = vector.load %arg22[%c8_42, %c16_43] : memref<16x32xf32, #tpu.memory_space<vmem>>, vector<8x16xf32>
    tpu.vector_store %arg22[%c8_42, %c16_43], %114 {strides = array<i32>} : memref<16x32xf32, #tpu.memory_space<vmem>>, vector<8x16xf32>,
    %c0_44 = arith.constant 0 : index
    %c0_45 = arith.constant 0 : index
    %116 = vector.load %arg22[%c0_44, %c0_45] : memref<16x32xf32, #tpu.memory_space<vmem>>, vector<16x32xf32>
    %c0_46 = arith.constant 0 : index
    %c0_47 = arith.constant 0 : index
    %c0_48 = arith.constant 0 : index
    %117 = vector.load %arg7[%c0_46, %c0_47, %c0_48] : memref<2x32x32xf32, #tpu.memory_space<vmem>>, vector<1x32x32xf32>
    %118 = vector.shape_cast %117 : vector<1x32x32xf32> to vector<32x32xf32>
    %cst_49 = arith.constant dense<0.000000e+00> : vector<16x32xf32>
    %119 = tpu.matmul %116, %118, %cst_49 {dimension_numbers = #tpu.dot_dimension_numbers<[1], [0], [0], [1], [0, 0, 1, 1], [], []>} : vector<16x32xf32>, vector<32x32xf32>, vector<16x32xf32> -> vector<16x32xf32>
    %c0_50 = arith.constant 0 : index
    %c0_51 = arith.constant 0 : index
    %c0_52 = arith.constant 0 : index
    %120 = vector.load %arg8[%c0_50, %c0_51, %c0_52] : memref<2x1x32xf32, #tpu.memory_space<vmem>>, vector<1x1x32xf32>
    %121 = vector.shape_cast %120 : vector<1x1x32xf32> to vector<1x32xf32>
    %122 = vector.broadcast %121 : vector<1x32xf32> to vector<16x32xf32>
    %123 = arith.addf %119, %122 : vector<16x32xf32>
    %124 = arith.addf %22, %123 : vector<16x32xf32>
    %c0_53 = arith.constant 0 : index
    %c0_54 = arith.constant 0 : index
    %c0_55 = arith.constant 0 : index
    %125 = vector.load %arg9[%c0_53, %c0_54, %c0_55] : memref<2x1x32xf32, #tpu.memory_space<vmem>>, vector<1x1x32xf32>
    %126 = vector.shape_cast %125 : vector<1x1x32xf32> to vector<1x32xf32>
    %c0_56 = arith.constant 0 : index
    %c0_57 = arith.constant 0 : index
    %c0_58 = arith.constant 0 : index
    %127 = vector.load %arg10[%c0_56, %c0_57, %c0_58] : memref<2x1x32xf32, #tpu.memory_space<vmem>>, vector<1x1x32xf32>
    %128 = vector.shape_cast %127 : vector<1x1x32xf32> to vector<1x32xf32>
    %cst_59 = arith.constant dense<0.000000e+00> : vector<16xf32>
    %129 = vector.multi_reduction <add>, %124, %cst_59 [1] : vector<16x32xf32> to vector<16xf32>
    %130 = vector.shape_cast %129 : vector<16xf32> to vector<16x1xf32>
    %cst_60 = arith.constant 3.200000e+01 : f32
    %131 = vector.broadcast %cst_60 : f32 to vector<16x1xf32>
    %132 = arith.divf %130, %131 : vector<16x1xf32>
    %133 = vector.broadcast %132 : vector<16x1xf32> to vector<16x32xf32>
    %134 = arith.subf %124, %133 : vector<16x32xf32>
    %135 = arith.mulf %134, %134 : vector<16x32xf32>
    %cst_61 = arith.constant dense<0.000000e+00> : vector<16xf32>
    %136 = vector.multi_reduction <add>, %135, %cst_61 [1] : vector<16x32xf32> to vector<16xf32>
    %137 = vector.shape_cast %136 : vector<16xf32> to vector<16x1xf32>
    %cst_62 = arith.constant 3.200000e+01 : f32
    %138 = vector.broadcast %cst_62 : f32 to vector<16x1xf32>
    %139 = arith.divf %137, %138 : vector<16x1xf32>
    %cst_63 = arith.constant 9.99999996E-13 : f32
    %140 = vector.broadcast %cst_63 : f32 to vector<16x1xf32>
    %141 = arith.addf %139, %140 : vector<16x1xf32>
    %142 = math.rsqrt %141 : vector<16x1xf32>
    %143 = vector.broadcast %142 : vector<16x1xf32> to vector<16x32xf32>
    %144 = arith.mulf %134, %143 : vector<16x32xf32>
    %145 = vector.broadcast %126 : vector<1x32xf32> to vector<16x32xf32>
    %146 = arith.mulf %144, %145 : vector<16x32xf32>
    %147 = vector.broadcast %128 : vector<1x32xf32> to vector<16x32xf32>
    %148 = arith.addf %146, %147 : vector<16x32xf32>
    %c0_64 = arith.constant 0 : index
    %c0_65 = arith.constant 0 : index
    %c0_66 = arith.constant 0 : index
    %149 = vector.load %arg11[%c0_64, %c0_65, %c0_66] : memref<2x32x64xf32, #tpu.memory_space<vmem>>, vector<1x32x64xf32>
    %150 = vector.shape_cast %149 : vector<1x32x64xf32> to vector<32x64xf32>
    %cst_67 = arith.constant dense<0.000000e+00> : vector<16x64xf32>
    %151 = tpu.matmul %148, %150, %cst_67 {dimension_numbers = #tpu.dot_dimension_numbers<[1], [0], [0], [1], [0, 0, 1, 1], [], []>} : vector<16x32xf32>, vector<32x64xf32>, vector<16x64xf32> -> vector<16x64xf32>
    %c0_68 = arith.constant 0 : index
    %c0_69 = arith.constant 0 : index
    %c0_70 = arith.constant 0 : index
    %152 = vector.load %arg12[%c0_68, %c0_69, %c0_70] : memref<2x1x64xf32, #tpu.memory_space<vmem>>, vector<1x1x64xf32>
    %153 = vector.shape_cast %152 : vector<1x1x64xf32> to vector<1x64xf32>
    %154 = vector.broadcast %153 : vector<1x64xf32> to vector<16x64xf32>
    %155 = arith.addf %151, %154 : vector<16x64xf32>
    %cst_71 = arith.constant 5.000000e-01 : f32
    %156 = vector.broadcast %cst_71 : f32 to vector<16x64xf32>
    %157 = arith.mulf %156, %155 : vector<16x64xf32>
    %cst_72 = arith.constant 0.707106769 : f32
    %158 = vector.broadcast %cst_72 : f32 to vector<16x64xf32>
    %159 = arith.mulf %155, %158 : vector<16x64xf32>
    %160 = math.erf %159 : vector<16x64xf32>
    %cst_73 = arith.constant 1.000000e+00 : f32
    %161 = vector.broadcast %cst_73 : f32 to vector<16x64xf32>
    %162 = arith.addf %161, %160 : vector<16x64xf32>
    %163 = arith.mulf %157, %162 : vector<16x64xf32>
    %c0_74 = arith.constant 0 : index
    %c0_75 = arith.constant 0 : index
    %c0_76 = arith.constant 0 : index
    %164 = vector.load %arg13[%c0_74, %c0_75, %c0_76] : memref<2x64x32xf32, #tpu.memory_space<vmem>>, vector<1x64x32xf32>
    %165 = vector.shape_cast %164 : vector<1x64x32xf32> to vector<64x32xf32>
    %cst_77 = arith.constant dense<0.000000e+00> : vector<16x32xf32>
    %166 = tpu.matmul %163, %165, %cst_77 {dimension_numbers = #tpu.dot_dimension_numbers<[1], [0], [0], [1], [0, 0, 1, 1], [], []>} : vector<16x64xf32>, vector<64x32xf32>, vector<16x32xf32> -> vector<16x32xf32>
    %c0_78 = arith.constant 0 : index
    %c0_79 = arith.constant 0 : index
    %c0_80 = arith.constant 0 : index
    %167 = vector.load %arg14[%c0_78, %c0_79, %c0_80] : memref<2x1x32xf32, #tpu.memory_space<vmem>>, vector<1x1x32xf32>
    %168 = vector.shape_cast %167 : vector<1x1x32xf32> to vector<1x32xf32>
    %169 = vector.broadcast %168 : vector<1x32xf32> to vector<16x32xf32>
    %170 = arith.addf %166, %169 : vector<16x32xf32>
    %171 = arith.addf %148, %170 : vector<16x32xf32>
    %c0_81 = arith.constant 0 : index
    %c0_82 = arith.constant 0 : index
    %c0_83 = arith.constant 0 : index
    %172 = vector.load %arg15[%c0_81, %c0_82, %c0_83] : memref<2x1x32xf32, #tpu.memory_space<vmem>>, vector<1x1x32xf32>
    %173 = vector.shape_cast %172 : vector<1x1x32xf32> to vector<1x32xf32>
    %c0_84 = arith.constant 0 : index
    %c0_85 = arith.constant 0 : index
    %c0_86 = arith.constant 0 : index
    %174 = vector.load %arg16[%c0_84, %c0_85, %c0_86] : memref<2x1x32xf32, #tpu.memory_space<vmem>>, vector<1x1x32xf32>
    %175 = vector.shape_cast %174 : vector<1x1x32xf32> to vector<1x32xf32>
    %cst_87 = arith.constant dense<0.000000e+00> : vector<16xf32>
    %176 = vector.multi_reduction <add>, %171, %cst_87 [1] : vector<16x32xf32> to vector<16xf32>
    %177 = vector.shape_cast %176 : vector<16xf32> to vector<16x1xf32>
    %cst_88 = arith.constant 3.200000e+01 : f32
    %178 = vector.broadcast %cst_88 : f32 to vector<16x1xf32>
    %179 = arith.divf %177, %178 : vector<16x1xf32>
    %180 = vector.broadcast %179 : vector<16x1xf32> to vector<16x32xf32>
    %181 = arith.subf %171, %180 : vector<16x32xf32>
    %182 = arith.mulf %181, %181 : vector<16x32xf32>
    %cst_89 = arith.constant dense<0.000000e+00> : vector<16xf32>
    %183 = vector.multi_reduction <add>, %182, %cst_89 [1] : vector<16x32xf32> to vector<16xf32>
    %184 = vector.shape_cast %183 : vector<16xf32> to vector<16x1xf32>
    %cst_90 = arith.constant 3.200000e+01 : f32
    %185 = vector.broadcast %cst_90 : f32 to vector<16x1xf32>
    %186 = arith.divf %184, %185 : vector<16x1xf32>
    %cst_91 = arith.constant 9.99999996E-13 : f32
    %187 = vector.broadcast %cst_91 : f32 to vector<16x1xf32>
    %188 = arith.addf %186, %187 : vector<16x1xf32>
    %189 = math.rsqrt %188 : vector<16x1xf32>
    %190 = vector.broadcast %189 : vector<16x1xf32> to vector<16x32xf32>
    %191 = arith.mulf %181, %190 : vector<16x32xf32>
    %192 = vector.broadcast %173 : vector<1x32xf32> to vector<16x32xf32>
    %193 = arith.mulf %191, %192 : vector<16x32xf32>
    %194 = vector.broadcast %175 : vector<1x32xf32> to vector<16x32xf32>
    %195 = arith.addf %193, %194 : vector<16x32xf32>
    %c1 = arith.constant 1 : index
    %c0_92 = arith.constant 0 : index
    %c0_93 = arith.constant 0 : index
    %196 = vector.load %arg5[%c1, %c0_92, %c0_93] : memref<2x32x96xf32, #tpu.memory_space<vmem>>, vector<1x32x96xf32>
    %197 = vector.shape_cast %196 : vector<1x32x96xf32> to vector<32x96xf32>
    %cst_94 = arith.constant dense<0.000000e+00> : vector<16x96xf32>
    %198 = tpu.matmul %195, %197, %cst_94 {dimension_numbers = #tpu.dot_dimension_numbers<[1], [0], [0], [1], [0, 0, 1, 1], [], []>} : vector<16x32xf32>, vector<32x96xf32>, vector<16x96xf32> -> vector<16x96xf32>
    %c1_95 = arith.constant 1 : index
    %c0_96 = arith.constant 0 : index
    %c0_97 = arith.constant 0 : index
    %199 = vector.load %arg6[%c1_95, %c0_96, %c0_97] : memref<2x1x96xf32, #tpu.memory_space<vmem>>, vector<1x1x96xf32>
    %200 = vector.shape_cast %199 : vector<1x1x96xf32> to vector<1x96xf32>
    %201 = vector.broadcast %200 : vector<1x96xf32> to vector<16x96xf32>
    %202 = arith.addf %198, %201 : vector<16x96xf32>
    %203 = vector.extract_strided_slice %202 {offsets = [0, 0], sizes = [16, 32], strides = [1, 1]} : vector<16x96xf32> to vector<16x32xf32>
    %204 = vector.extract_strided_slice %202 {offsets = [0, 32], sizes = [16, 32], strides = [1, 1]} : vector<16x96xf32> to vector<16x32xf32>
    %205 = vector.extract_strided_slice %202 {offsets = [0, 64], sizes = [16, 32], strides = [1, 1]} : vector<16x96xf32> to vector<16x32xf32>
    %206 = vector.extract_strided_slice %23 {offsets = [0, 0], sizes = [1, 8], strides = [1, 1]} : vector<2x8xf32> to vector<1x8xf32>
    %207 = vector.extract_strided_slice %203 {offsets = [0, 0], sizes = [8, 16], strides = [1, 1]} : vector<16x32xf32> to vector<8x16xf32>
    %208 = vector.extract_strided_slice %204 {offsets = [0, 0], sizes = [8, 16], strides = [1, 1]} : vector<16x32xf32> to vector<8x16xf32>
    %209 = vector.extract_strided_slice %205 {offsets = [0, 0], sizes = [8, 16], strides = [1, 1]} : vector<16x32xf32> to vector<8x16xf32>
    %cst_98 = arith.constant dense<0.000000e+00> : vector<8x8xf32>
    %210 = tpu.matmul %207, %208, %cst_98 {dimension_numbers = #tpu.dot_dimension_numbers<[1], [1], [0], [0], [0, 0, 1, 0], [], []>} : vector<8x16xf32>, vector<8x16xf32>, vector<8x8xf32> -> vector<8x8xf32>
    %cst_99 = arith.constant 2.500000e-01 : f32
    %211 = vector.broadcast %cst_99 : f32 to vector<8x8xf32>
    %212 = arith.mulf %210, %211 : vector<8x8xf32>
    %213 = vector.broadcast %206 : vector<1x8xf32> to vector<8x8xf32>
    %214 = arith.addf %212, %213 : vector<8x8xf32>
    %cst_100 = arith.constant dense<0xFF800000> : vector<8xf32>
    %215 = vector.multi_reduction <maximumf>, %214, %cst_100 [1] : vector<8x8xf32> to vector<8xf32>
    %216 = vector.shape_cast %215 : vector<8xf32> to vector<8x1xf32>
    %217 = vector.broadcast %216 : vector<8x1xf32> to vector<8x8xf32>
    %218 = arith.subf %214, %217 : vector<8x8xf32>
    %219 = math.exp %218 : vector<8x8xf32>
    %cst_101 = arith.constant dense<0.000000e+00> : vector<8xf32>
    %220 = vector.multi_reduction <add>, %219, %cst_101 [1] : vector<8x8xf32> to vector<8xf32>
    %221 = vector.shape_cast %220 : vector<8xf32> to vector<8x1xf32>
    %222 = tpu.reciprocal %221 {approx = true} : vector<8x1xf32> -> vector<8x1xf32>
    %223 = vector.broadcast %222 : vector<8x1xf32> to vector<8x8xf32>
    %224 = arith.mulf %219, %223 : vector<8x8xf32>
    %cst_102 = arith.constant dense<0.000000e+00> : vector<8x16xf32>
    %225 = tpu.matmul %224, %209, %cst_102 {dimension_numbers = #tpu.dot_dimension_numbers<[1], [0], [0], [1], [0, 0, 1, 1], [], []>} : vector<8x8xf32>, vector<8x16xf32>, vector<8x16xf32> -> vector<8x16xf32>
    %c0_103 = arith.constant 0 : index
    %c0_104 = arith.constant 0 : index
    %226 = vector.load %arg22[%c0_103, %c0_104] : memref<16x32xf32, #tpu.memory_space<vmem>>, vector<8x16xf32>
    tpu.vector_store %arg22[%c0_103, %c0_104], %225 {strides = array<i32>} : memref<16x32xf32, #tpu.memory_space<vmem>>, vector<8x16xf32>,
    %227 = vector.extract_strided_slice %203 {offsets = [0, 16], sizes = [8, 16], strides = [1, 1]} : vector<16x32xf32> to vector<8x16xf32>
    %228 = vector.extract_strided_slice %204 {offsets = [0, 16], sizes = [8, 16], strides = [1, 1]} : vector<16x32xf32> to vector<8x16xf32>
    %229 = vector.extract_strided_slice %205 {offsets = [0, 16], sizes = [8, 16], strides = [1, 1]} : vector<16x32xf32> to vector<8x16xf32>
    %cst_105 = arith.constant dense<0.000000e+00> : vector<8x8xf32>
    %230 = tpu.matmul %227, %228, %cst_105 {dimension_numbers = #tpu.dot_dimension_numbers<[1], [1], [0], [0], [0, 0, 1, 0], [], []>} : vector<8x16xf32>, vector<8x16xf32>, vector<8x8xf32> -> vector<8x8xf32>
    %cst_106 = arith.constant 2.500000e-01 : f32
    %231 = vector.broadcast %cst_106 : f32 to vector<8x8xf32>
    %232 = arith.mulf %230, %231 : vector<8x8xf32>
    %233 = vector.broadcast %206 : vector<1x8xf32> to vector<8x8xf32>
    %234 = arith.addf %232, %233 : vector<8x8xf32>
    %cst_107 = arith.constant dense<0xFF800000> : vector<8xf32>
    %235 = vector.multi_reduction <maximumf>, %234, %cst_107 [1] : vector<8x8xf32> to vector<8xf32>
    %236 = vector.shape_cast %235 : vector<8xf32> to vector<8x1xf32>
    %237 = vector.broadcast %236 : vector<8x1xf32> to vector<8x8xf32>
    %238 = arith.subf %234, %237 : vector<8x8xf32>
    %239 = math.exp %238 : vector<8x8xf32>
    %cst_108 = arith.constant dense<0.000000e+00> : vector<8xf32>
    %240 = vector.multi_reduction <add>, %239, %cst_108 [1] : vector<8x8xf32> to vector<8xf32>
    %241 = vector.shape_cast %240 : vector<8xf32> to vector<8x1xf32>
    %242 = tpu.reciprocal %241 {approx = true} : vector<8x1xf32> -> vector<8x1xf32>
    %243 = vector.broadcast %242 : vector<8x1xf32> to vector<8x8xf32>
    %244 = arith.mulf %239, %243 : vector<8x8xf32>
    %cst_109 = arith.constant dense<0.000000e+00> : vector<8x16xf32>
    %245 = tpu.matmul %244, %229, %cst_109 {dimension_numbers = #tpu.dot_dimension_numbers<[1], [0], [0], [1], [0, 0, 1, 1], [], []>} : vector<8x8xf32>, vector<8x16xf32>, vector<8x16xf32> -> vector<8x16xf32>
    %c0_110 = arith.constant 0 : index
    %c16_111 = arith.constant 16 : index
    %246 = vector.load %arg22[%c0_110, %c16_111] : memref<16x32xf32, #tpu.memory_space<vmem>>, vector<8x16xf32>
    tpu.vector_store %arg22[%c0_110, %c16_111], %245 {strides = array<i32>} : memref<16x32xf32, #tpu.memory_space<vmem>>, vector<8x16xf32>,
    %247 = vector.extract_strided_slice %23 {offsets = [1, 0], sizes = [1, 8], strides = [1, 1]} : vector<2x8xf32> to vector<1x8xf32>
    %248 = vector.extract_strided_slice %203 {offsets = [8, 0], sizes = [8, 16], strides = [1, 1]} : vector<16x32xf32> to vector<8x16xf32>
    %249 = vector.extract_strided_slice %204 {offsets = [8, 0], sizes = [8, 16], strides = [1, 1]} : vector<16x32xf32> to vector<8x16xf32>
    %250 = vector.extract_strided_slice %205 {offsets = [8, 0], sizes = [8, 16], strides = [1, 1]} : vector<16x32xf32> to vector<8x16xf32>
    %cst_112 = arith.constant dense<0.000000e+00> : vector<8x8xf32>
    %251 = tpu.matmul %248, %249, %cst_112 {dimension_numbers = #tpu.dot_dimension_numbers<[1], [1], [0], [0], [0, 0, 1, 0], [], []>} : vector<8x16xf32>, vector<8x16xf32>, vector<8x8xf32> -> vector<8x8xf32>
    %cst_113 = arith.constant 2.500000e-01 : f32
    %252 = vector.broadcast %cst_113 : f32 to vector<8x8xf32>
    %253 = arith.mulf %251, %252 : vector<8x8xf32>
    %254 = vector.broadcast %247 : vector<1x8xf32> to vector<8x8xf32>
    %255 = arith.addf %253, %254 : vector<8x8xf32>
    %cst_114 = arith.constant dense<0xFF800000> : vector<8xf32>
    %256 = vector.multi_reduction <maximumf>, %255, %cst_114 [1] : vector<8x8xf32> to vector<8xf32>
    %257 = vector.shape_cast %256 : vector<8xf32> to vector<8x1xf32>
    %258 = vector.broadcast %257 : vector<8x1xf32> to vector<8x8xf32>
    %259 = arith.subf %255, %258 : vector<8x8xf32>
    %260 = math.exp %259 : vector<8x8xf32>
    %cst_115 = arith.constant dense<0.000000e+00> : vector<8xf32>
    %261 = vector.multi_reduction <add>, %260, %cst_115 [1] : vector<8x8xf32> to vector<8xf32>
    %262 = vector.shape_cast %261 : vector<8xf32> to vector<8x1xf32>
    %263 = tpu.reciprocal %262 {approx = true} : vector<8x1xf32> -> vector<8x1xf32>
    %264 = vector.broadcast %263 : vector<8x1xf32> to vector<8x8xf32>
    %265 = arith.mulf %260, %264 : vector<8x8xf32>
    %cst_116 = arith.constant dense<0.000000e+00> : vector<8x16xf32>
    %266 = tpu.matmul %265, %250, %cst_116 {dimension_numbers = #tpu.dot_dimension_numbers<[1], [0], [0], [1], [0, 0, 1, 1], [], []>} : vector<8x8xf32>, vector<8x16xf32>, vector<8x16xf32> -> vector<8x16xf32>
    %c8_117 = arith.constant 8 : index
    %c0_118 = arith.constant 0 : index
    %267 = vector.load %arg22[%c8_117, %c0_118] : memref<16x32xf32, #tpu.memory_space<vmem>>, vector<8x16xf32>
    tpu.vector_store %arg22[%c8_117, %c0_118], %266 {strides = array<i32>} : memref<16x32xf32, #tpu.memory_space<vmem>>, vector<8x16xf32>,
    %268 = vector.extract_strided_slice %203 {offsets = [8, 16], sizes = [8, 16], strides = [1, 1]} : vector<16x32xf32> to vector<8x16xf32>
    %269 = vector.extract_strided_slice %204 {offsets = [8, 16], sizes = [8, 16], strides = [1, 1]} : vector<16x32xf32> to vector<8x16xf32>
    %270 = vector.extract_strided_slice %205 {offsets = [8, 16], sizes = [8, 16], strides = [1, 1]} : vector<16x32xf32> to vector<8x16xf32>
    %cst_119 = arith.constant dense<0.000000e+00> : vector<8x8xf32>
    %271 = tpu.matmul %268, %269, %cst_119 {dimension_numbers = #tpu.dot_dimension_numbers<[1], [1], [0], [0], [0, 0, 1, 0], [], []>} : vector<8x16xf32>, vector<8x16xf32>, vector<8x8xf32> -> vector<8x8xf32>
    %cst_120 = arith.constant 2.500000e-01 : f32
    %272 = vector.broadcast %cst_120 : f32 to vector<8x8xf32>
    %273 = arith.mulf %271, %272 : vector<8x8xf32>
    %274 = vector.broadcast %247 : vector<1x8xf32> to vector<8x8xf32>
    %275 = arith.addf %273, %274 : vector<8x8xf32>
    %cst_121 = arith.constant dense<0xFF800000> : vector<8xf32>
    %276 = vector.multi_reduction <maximumf>, %275, %cst_121 [1] : vector<8x8xf32> to vector<8xf32>
    %277 = vector.shape_cast %276 : vector<8xf32> to vector<8x1xf32>
    %278 = vector.broadcast %277 : vector<8x1xf32> to vector<8x8xf32>
    %279 = arith.subf %275, %278 : vector<8x8xf32>
    %280 = math.exp %279 : vector<8x8xf32>
    %cst_122 = arith.constant dense<0.000000e+00> : vector<8xf32>
    %281 = vector.multi_reduction <add>, %280, %cst_122 [1] : vector<8x8xf32> to vector<8xf32>
    %282 = vector.shape_cast %281 : vector<8xf32> to vector<8x1xf32>
    %283 = tpu.reciprocal %282 {approx = true} : vector<8x1xf32> -> vector<8x1xf32>
    %284 = vector.broadcast %283 : vector<8x1xf32> to vector<8x8xf32>
    %285 = arith.mulf %280, %284 : vector<8x8xf32>
    %cst_123 = arith.constant dense<0.000000e+00> : vector<8x16xf32>
    %286 = tpu.matmul %285, %270, %cst_123 {dimension_numbers = #tpu.dot_dimension_numbers<[1], [0], [0], [1], [0, 0, 1, 1], [], []>} : vector<8x8xf32>, vector<8x16xf32>, vector<8x16xf32> -> vector<8x16xf32>
    %c8_124 = arith.constant 8 : index
    %c16_125 = arith.constant 16 : index
    %287 = vector.load %arg22[%c8_124, %c16_125] : memref<16x32xf32, #tpu.memory_space<vmem>>, vector<8x16xf32>
    tpu.vector_store %arg22[%c8_124, %c16_125], %286 {strides = array<i32>} : memref<16x32xf32, #tpu.memory_space<vmem>>, vector<8x16xf32>,
    %c0_126 = arith.constant 0 : index
    %c0_127 = arith.constant 0 : index
    %288 = vector.load %arg22[%c0_126, %c0_127] : memref<16x32xf32, #tpu.memory_space<vmem>>, vector<16x32xf32>
    %c1_128 = arith.constant 1 : index
    %c0_129 = arith.constant 0 : index
    %c0_130 = arith.constant 0 : index
    %289 = vector.load %arg7[%c1_128, %c0_129, %c0_130] : memref<2x32x32xf32, #tpu.memory_space<vmem>>, vector<1x32x32xf32>
    %290 = vector.shape_cast %289 : vector<1x32x32xf32> to vector<32x32xf32>
    %cst_131 = arith.constant dense<0.000000e+00> : vector<16x32xf32>
    %291 = tpu.matmul %288, %290, %cst_131 {dimension_numbers = #tpu.dot_dimension_numbers<[1], [0], [0], [1], [0, 0, 1, 1], [], []>} : vector<16x32xf32>, vector<32x32xf32>, vector<16x32xf32> -> vector<16x32xf32>
    %c1_132 = arith.constant 1 : index
    %c0_133 = arith.constant 0 : index
    %c0_134 = arith.constant 0 : index
    %292 = vector.load %arg8[%c1_132, %c0_133, %c0_134] : memref<2x1x32xf32, #tpu.memory_space<vmem>>, vector<1x1x32xf32>
    %293 = vector.shape_cast %292 : vector<1x1x32xf32> to vector<1x32xf32>
    %294 = vector.broadcast %293 : vector<1x32xf32> to vector<16x32xf32>
    %295 = arith.addf %291, %294 : vector<16x32xf32>
    %296 = arith.addf %195, %295 : vector<16x32xf32>
    %c1_135 = arith.constant 1 : index
    %c0_136 = arith.constant 0 : index
    %c0_137 = arith.constant 0 : index
    %297 = vector.load %arg9[%c1_135, %c0_136, %c0_137] : memref<2x1x32xf32, #tpu.memory_space<vmem>>, vector<1x1x32xf32>
    %298 = vector.shape_cast %297 : vector<1x1x32xf32> to vector<1x32xf32>
    %c1_138 = arith.constant 1 : index
    %c0_139 = arith.constant 0 : index
    %c0_140 = arith.constant 0 : index
    %299 = vector.load %arg10[%c1_138, %c0_139, %c0_140] : memref<2x1x32xf32, #tpu.memory_space<vmem>>, vector<1x1x32xf32>
    %300 = vector.shape_cast %299 : vector<1x1x32xf32> to vector<1x32xf32>
    %cst_141 = arith.constant dense<0.000000e+00> : vector<16xf32>
    %301 = vector.multi_reduction <add>, %296, %cst_141 [1] : vector<16x32xf32> to vector<16xf32>
    %302 = vector.shape_cast %301 : vector<16xf32> to vector<16x1xf32>
    %cst_142 = arith.constant 3.200000e+01 : f32
    %303 = vector.broadcast %cst_142 : f32 to vector<16x1xf32>
    %304 = arith.divf %302, %303 : vector<16x1xf32>
    %305 = vector.broadcast %304 : vector<16x1xf32> to vector<16x32xf32>
    %306 = arith.subf %296, %305 : vector<16x32xf32>
    %307 = arith.mulf %306, %306 : vector<16x32xf32>
    %cst_143 = arith.constant dense<0.000000e+00> : vector<16xf32>
    %308 = vector.multi_reduction <add>, %307, %cst_143 [1] : vector<16x32xf32> to vector<16xf32>
    %309 = vector.shape_cast %308 : vector<16xf32> to vector<16x1xf32>
    %cst_144 = arith.constant 3.200000e+01 : f32
    %310 = vector.broadcast %cst_144 : f32 to vector<16x1xf32>
    %311 = arith.divf %309, %310 : vector<16x1xf32>
    %cst_145 = arith.constant 9.99999996E-13 : f32
    %312 = vector.broadcast %cst_145 : f32 to vector<16x1xf32>
    %313 = arith.addf %311, %312 : vector<16x1xf32>
    %314 = math.rsqrt %313 : vector<16x1xf32>
    %315 = vector.broadcast %314 : vector<16x1xf32> to vector<16x32xf32>
    %316 = arith.mulf %306, %315 : vector<16x32xf32>
    %317 = vector.broadcast %298 : vector<1x32xf32> to vector<16x32xf32>
    %318 = arith.mulf %316, %317 : vector<16x32xf32>
    %319 = vector.broadcast %300 : vector<1x32xf32> to vector<16x32xf32>
    %320 = arith.addf %318, %319 : vector<16x32xf32>
    %c1_146 = arith.constant 1 : index
    %c0_147 = arith.constant 0 : index
    %c0_148 = arith.constant 0 : index
    %321 = vector.load %arg11[%c1_146, %c0_147, %c0_148] : memref<2x32x64xf32, #tpu.memory_space<vmem>>, vector<1x32x64xf32>
    %322 = vector.shape_cast %321 : vector<1x32x64xf32> to vector<32x64xf32>
    %cst_149 = arith.constant dense<0.000000e+00> : vector<16x64xf32>
    %323 = tpu.matmul %320, %322, %cst_149 {dimension_numbers = #tpu.dot_dimension_numbers<[1], [0], [0], [1], [0, 0, 1, 1], [], []>} : vector<16x32xf32>, vector<32x64xf32>, vector<16x64xf32> -> vector<16x64xf32>
    %c1_150 = arith.constant 1 : index
    %c0_151 = arith.constant 0 : index
    %c0_152 = arith.constant 0 : index
    %324 = vector.load %arg12[%c1_150, %c0_151, %c0_152] : memref<2x1x64xf32, #tpu.memory_space<vmem>>, vector<1x1x64xf32>
    %325 = vector.shape_cast %324 : vector<1x1x64xf32> to vector<1x64xf32>
    %326 = vector.broadcast %325 : vector<1x64xf32> to vector<16x64xf32>
    %327 = arith.addf %323, %326 : vector<16x64xf32>
    %cst_153 = arith.constant 5.000000e-01 : f32
    %328 = vector.broadcast %cst_153 : f32 to vector<16x64xf32>
    %329 = arith.mulf %328, %327 : vector<16x64xf32>
    %cst_154 = arith.constant 0.707106769 : f32
    %330 = vector.broadcast %cst_154 : f32 to vector<16x64xf32>
    %331 = arith.mulf %327, %330 : vector<16x64xf32>
    %332 = math.erf %331 : vector<16x64xf32>
    %cst_155 = arith.constant 1.000000e+00 : f32
    %333 = vector.broadcast %cst_155 : f32 to vector<16x64xf32>
    %334 = arith.addf %333, %332 : vector<16x64xf32>
    %335 = arith.mulf %329, %334 : vector<16x64xf32>
    %c1_156 = arith.constant 1 : index
    %c0_157 = arith.constant 0 : index
    %c0_158 = arith.constant 0 : index
    %336 = vector.load %arg13[%c1_156, %c0_157, %c0_158] : memref<2x64x32xf32, #tpu.memory_space<vmem>>, vector<1x64x32xf32>
    %337 = vector.shape_cast %336 : vector<1x64x32xf32> to vector<64x32xf32>
    %cst_159 = arith.constant dense<0.000000e+00> : vector<16x32xf32>
    %338 = tpu.matmul %335, %337, %cst_159 {dimension_numbers = #tpu.dot_dimension_numbers<[1], [0], [0], [1], [0, 0, 1, 1], [], []>} : vector<16x64xf32>, vector<64x32xf32>, vector<16x32xf32> -> vector<16x32xf32>
    %c1_160 = arith.constant 1 : index
    %c0_161 = arith.constant 0 : index
    %c0_162 = arith.constant 0 : index
    %339 = vector.load %arg14[%c1_160, %c0_161, %c0_162] : memref<2x1x32xf32, #tpu.memory_space<vmem>>, vector<1x1x32xf32>
    %340 = vector.shape_cast %339 : vector<1x1x32xf32> to vector<1x32xf32>
    %341 = vector.broadcast %340 : vector<1x32xf32> to vector<16x32xf32>
    %342 = arith.addf %338, %341 : vector<16x32xf32>
    %343 = arith.addf %320, %342 : vector<16x32xf32>
    %c1_163 = arith.constant 1 : index
    %c0_164 = arith.constant 0 : index
    %c0_165 = arith.constant 0 : index
    %344 = vector.load %arg15[%c1_163, %c0_164, %c0_165] : memref<2x1x32xf32, #tpu.memory_space<vmem>>, vector<1x1x32xf32>
    %345 = vector.shape_cast %344 : vector<1x1x32xf32> to vector<1x32xf32>
    %c1_166 = arith.constant 1 : index
    %c0_167 = arith.constant 0 : index
    %c0_168 = arith.constant 0 : index
    %346 = vector.load %arg16[%c1_166, %c0_167, %c0_168] : memref<2x1x32xf32, #tpu.memory_space<vmem>>, vector<1x1x32xf32>
    %347 = vector.shape_cast %346 : vector<1x1x32xf32> to vector<1x32xf32>
    %cst_169 = arith.constant dense<0.000000e+00> : vector<16xf32>
    %348 = vector.multi_reduction <add>, %343, %cst_169 [1] : vector<16x32xf32> to vector<16xf32>
    %349 = vector.shape_cast %348 : vector<16xf32> to vector<16x1xf32>
    %cst_170 = arith.constant 3.200000e+01 : f32
    %350 = vector.broadcast %cst_170 : f32 to vector<16x1xf32>
    %351 = arith.divf %349, %350 : vector<16x1xf32>
    %352 = vector.broadcast %351 : vector<16x1xf32> to vector<16x32xf32>
    %353 = arith.subf %343, %352 : vector<16x32xf32>
    %354 = arith.mulf %353, %353 : vector<16x32xf32>
    %cst_171 = arith.constant dense<0.000000e+00> : vector<16xf32>
    %355 = vector.multi_reduction <add>, %354, %cst_171 [1] : vector<16x32xf32> to vector<16xf32>
    %356 = vector.shape_cast %355 : vector<16xf32> to vector<16x1xf32>
    %cst_172 = arith.constant 3.200000e+01 : f32
    %357 = vector.broadcast %cst_172 : f32 to vector<16x1xf32>
    %358 = arith.divf %356, %357 : vector<16x1xf32>
    %cst_173 = arith.constant 9.99999996E-13 : f32
    %359 = vector.broadcast %cst_173 : f32 to vector<16x1xf32>
    %360 = arith.addf %358, %359 : vector<16x1xf32>
    %361 = math.rsqrt %360 : vector<16x1xf32>
    %362 = vector.broadcast %361 : vector<16x1xf32> to vector<16x32xf32>
    %363 = arith.mulf %353, %362 : vector<16x32xf32>
    %364 = vector.broadcast %345 : vector<1x32xf32> to vector<16x32xf32>
    %365 = arith.mulf %363, %364 : vector<16x32xf32>
    %366 = vector.broadcast %347 : vector<1x32xf32> to vector<16x32xf32>
    %367 = arith.addf %365, %366 : vector<16x32xf32>
    %c0_174 = arith.constant 0 : index
    %c0_175 = arith.constant 0 : index
    %368 = vector.load %arg17[%c0_174, %c0_175] : memref<32x32xf32, #tpu.memory_space<vmem>>, vector<32x32xf32>
    %cst_176 = arith.constant dense<0.000000e+00> : vector<16x32xf32>
    %369 = tpu.matmul %367, %368, %cst_176 {dimension_numbers = #tpu.dot_dimension_numbers<[1], [0], [0], [1], [0, 0, 1, 1], [], []>} : vector<16x32xf32>, vector<32x32xf32>, vector<16x32xf32> -> vector<16x32xf32>
    %c0_177 = arith.constant 0 : index
    %c0_178 = arith.constant 0 : index
    %370 = vector.load %arg18[%c0_177, %c0_178] : memref<1x32xf32, #tpu.memory_space<vmem>>, vector<1x32xf32>
    %371 = vector.broadcast %370 : vector<1x32xf32> to vector<16x32xf32>
    %372 = arith.addf %369, %371 : vector<16x32xf32>
    %373 = math.tanh %372 : vector<16x32xf32>
    %c0_179 = arith.constant 0 : index
    %c0_180 = arith.constant 0 : index
    %374 = vector.load %arg19[%c0_179, %c0_180] : memref<32x128xf32, #tpu.memory_space<vmem>>, vector<32x128xf32>
    %cst_181 = arith.constant dense<0.000000e+00> : vector<16x128xf32>
    %375 = tpu.matmul %373, %374, %cst_181 {dimension_numbers = #tpu.dot_dimension_numbers<[1], [0], [0], [1], [0, 0, 1, 1], [], []>} : vector<16x32xf32>, vector<32x128xf32>, vector<16x128xf32> -> vector<16x128xf32>
    %c0_182 = arith.constant 0 : index
    %c0_183 = arith.constant 0 : index
    %376 = vector.load %arg20[%c0_182, %c0_183] : memref<1x128xf32, #tpu.memory_space<vmem>>, vector<1x128xf32>
    %377 = vector.broadcast %376 : vector<1x128xf32> to vector<16x128xf32>
    %378 = arith.addf %375, %377 : vector<16x128xf32>
    %c0_184 = arith.constant 0 : index
    %c0_185 = arith.constant 0 : index
    %379 = vector.load %arg21[%c0_184, %c0_185] : memref<16x128xf32, #tpu.memory_space<vmem>>, vector<16x128xf32>
    tpu.vector_store %arg21[%c0_184, %c0_185], %378 {strides = array<i32>} : memref<16x128xf32, #tpu.memory_space<vmem>>, vector<16x128xf32>,
    return
  }
  func.func @transform_0(%arg0: i32) -> (i32, i32) {
    %c0_i32 = arith.constant 0 : i32
    %c0_i32_0 = arith.constant 0 : i32
    %c0_i32_1 = arith.constant 0 : i32
    return %c0_i32, %c0_i32_0 : i32, i32
  }
  func.func @transform_1(%arg0: i32) -> (i32, i32) {
    %c0_i32 = arith.constant 0 : i32
    %c0_i32_0 = arith.constant 0 : i32
    %c0_i32_1 = arith.constant 0 : i32
    return %c0_i32, %c0_i32_0 : i32, i32
  }
  func.func @transform_2(%arg0: i32) -> (i32, i32) {
    %c0_i32 = arith.constant 0 : i32
    %c0_i32_0 = arith.constant 0 : i32
    %c0_i32_1 = arith.constant 0 : i32
    return %c0_i32, %c0_i32_0 : i32, i32
  }
  func.func @transform_3(%arg0: i32) -> (i32, i32) {
    %c0_i32 = arith.constant 0 : i32
    %c0_i32_0 = arith.constant 0 : i32
    %c0_i32_1 = arith.constant 0 : i32
    return %c0_i32, %c0_i32_0 : i32, i32
  }
  func.func @transform_4(%arg0: i32) -> (i32, i32, i32) {
    %c0_i32 = arith.constant 0 : i32
    %c0_i32_0 = arith.constant 0 : i32
    %c0_i32_1 = arith.constant 0 : i32
    %c0_i32_2 = arith.constant 0 : i32
    return %c0_i32, %c0_i32_0, %c0_i32_1 : i32, i32, i32
  }
  func.func @transform_5(%arg0: i32) -> (i32, i32, i32) {
    %c0_i32 = arith.constant 0 : i32
    %c0_i32_0 = arith.constant 0 : i32
    %c0_i32_1 = arith.constant 0 : i32
    %c0_i32_2 = arith.constant 0 : i32
    return %c0_i32, %c0_i32_0, %c0_i32_1 : i32, i32, i32
  }
  func.func @transform_6(%arg0: i32) -> (i32, i32, i32) {
    %c0_i32 = arith.constant 0 : i32
    %c0_i32_0 = arith.constant 0 : i32
    %c0_i32_1 = arith.constant 0 : i32
    %c0_i32_2 = arith.constant 0 : i32
    return %c0_i32, %c0_i32_0, %c0_i32_1 : i32, i32, i32
  }
  func.func @transform_7(%arg0: i32) -> (i32, i32, i32) {
    %c0_i32 = arith.constant 0 : i32
    %c0_i32_0 = arith.constant 0 : i32
    %c0_i32_1 = arith.constant 0 : i32
    %c0_i32_2 = arith.constant 0 : i32
    return %c0_i32, %c0_i32_0, %c0_i32_1 : i32, i32, i32
  }
  func.func @transform_8(%arg0: i32) -> (i32, i32, i32) {
    %c0_i32 = arith.constant 0 : i32
    %c0_i32_0 = arith.constant 0 : i32
    %c0_i32_1 = arith.constant 0 : i32
    %c0_i32_2 = arith.constant 0 : i32
    return %c0_i32, %c0_i32_0, %c0_i32_1 : i32, i32, i32
  }
  func.func @transform_9(%arg0: i32) -> (i32, i32, i32) {
    %c0_i32 = arith.constant 0 : i32
    %c0_i32_0 = arith.constant 0 : i32
    %c0_i32_1 = arith.constant 0 : i32
    %c0_i32_2 = arith.constant 0 : i32
    return %c0_i32, %c0_i32_0, %c0_i32_1 : i32, i32, i32
  }
  func.func @transform_10(%arg0: i32) -> (i32, i32, i32) {
    %c0_i32 = arith.constant 0 : i32
    %c0_i32_0 = arith.constant 0 : i32
    %c0_i32_1 = arith.constant 0 : i32
    %c0_i32_2 = arith.constant 0 : i32
    return %c0_i32, %c0_i32_0, %c0_i32_1 : i32, i32, i32
  }
  func.func @transform_11(%arg0: i32) -> (i32, i32, i32) {
    %c0_i32 = arith.constant 0 : i32
    %c0_i32_0 = arith.constant 0 : i32
    %c0_i32_1 = arith.constant 0 : i32
    %c0_i32_2 = arith.constant 0 : i32
    return %c0_i32, %c0_i32_0, %c0_i32_1 : i32, i32, i32
  }
  func.func @transform_12(%arg0: i32) -> (i32, i32, i32) {
    %c0_i32 = arith.constant 0 : i32
    %c0_i32_0 = arith.constant 0 : i32
    %c0_i32_1 = arith.constant 0 : i32
    %c0_i32_2 = arith.constant 0 : i32
    return %c0_i32, %c0_i32_0, %c0_i32_1 : i32, i32, i32
  }
  func.func @transform_13(%arg0: i32) -> (i32, i32, i32) {
    %c0_i32 = arith.constant 0 : i32
    %c0_i32_0 = arith.constant 0 : i32
    %c0_i32_1 = arith.constant 0 : i32
    %c0_i32_2 = arith.constant 0 : i32
    return %c0_i32, %c0_i32_0, %c0_i32_1 : i32, i32, i32
  }
  func.func @transform_14(%arg0: i32) -> (i32, i32, i32) {
    %c0_i32 = arith.constant 0 : i32
    %c0_i32_0 = arith.constant 0 : i32
    %c0_i32_1 = arith.constant 0 : i32
    %c0_i32_2 = arith.constant 0 : i32
    return %c0_i32, %c0_i32_0, %c0_i32_1 : i32, i32, i32
  }
  func.func @transform_15(%arg0: i32) -> (i32, i32, i32) {
    %c0_i32 = arith.constant 0 : i32
    %c0_i32_0 = arith.constant 0 : i32
    %c0_i32_1 = arith.constant 0 : i32
    %c0_i32_2 = arith.constant 0 : i32
    return %c0_i32, %c0_i32_0, %c0_i32_1 : i32, i32, i32
  }
  func.func @transform_16(%arg0: i32) -> (i32, i32) {
    %c0_i32 = arith.constant 0 : i32
    %c0_i32_0 = arith.constant 0 : i32
    %c0_i32_1 = arith.constant 0 : i32
    return %c0_i32, %c0_i32_0 : i32, i32
  }
  func.func @transform_17(%arg0: i32) -> (i32, i32) {
    %c0_i32 = arith.constant 0 : i32
    %c0_i32_0 = arith.constant 0 : i32
    %c0_i32_1 = arith.constant 0 : i32
    return %c0_i32, %c0_i32_0 : i32, i32
  }
  func.func @transform_18(%arg0: i32) -> (i32, i32) {
    %c0_i32 = arith.constant 0 : i32
    %c0_i32_0 = arith.constant 0 : i32
    %c0_i32_1 = arith.constant 0 : i32
    return %c0_i32, %c0_i32_0 : i32, i32
  }
  func.func @transform_19(%arg0: i32) -> (i32, i32) {
    %c0_i32 = arith.constant 0 : i32
    %c0_i32_0 = arith.constant 0 : i32
    %c0_i32_1 = arith.constant 0 : i32
    return %c0_i32, %c0_i32_0 : i32, i32
  }
  func.func @transform_20(%arg0: i32) -> (i32, i32) {
    %c0_i32 = arith.constant 0 : i32
    %c0_i32_0 = arith.constant 0 : i32
    %c0_i32_1 = arith.constant 0 : i32
    return %c0_i32, %c0_i32_0 : i32, i32
  }
}

</mosaic_0001>

<llo_original>
// kernel: inner_bert_classification_forward.1
$region0: #{inner_bert_classification_forward.1}
  #allocation0 [shape = 'u32[]', space=smem, size = 0x4, offset = 0x4, fixed_abs, tag = 'smem constant byte address 0x4 - core index']
  #allocation1 [shape = 'u32[72,128]{1,0:T(1,128)}', space=vmem, size = 0x9000, scoped, tag = 'internal scratch']
  #allocation2 [shape = 'f32[16,32]{1,0:T(8,128)}', space=vmem, size = 0x2000, scoped, tag = 'scratch operand']
  %s0 = inlined_call_operand.vmem [shape: f32[16,32], index: 0, kind: input, shape index: {}]
  %s1 = inlined_call_operand.vmem [shape: f32[2,8], index: 1, kind: input, shape index: {}]
  %s2 = inlined_call_operand.vmem [shape: f32[1,32], index: 2, kind: input, shape index: {}]
  %s3 = inlined_call_operand.vmem [shape: f32[1,32], index: 3, kind: input, shape index: {}]
  %s4 = inlined_call_operand.vmem [shape: f32[2,32,96], index: 4, kind: input, shape index: {}]
  %s5 = inlined_call_operand.vmem [shape: f32[2,1,96], index: 5, kind: input, shape index: {}]
  %s6 = inlined_call_operand.vmem [shape: f32[2,32,32], index: 6, kind: input, shape index: {}]
  %s7 = inlined_call_operand.vmem [shape: f32[2,1,32], index: 7, kind: input, shape index: {}]
  %s8 = inlined_call_operand.vmem [shape: f32[2,1,32], index: 8, kind: input, shape index: {}]
  %s9 = inlined_call_operand.vmem [shape: f32[2,1,32], index: 9, kind: input, shape index: {}]
  %s10 = inlined_call_operand.vmem [shape: f32[2,32,64], index: 10, kind: input, shape index: {}]
  %s11 = inlined_call_operand.vmem [shape: f32[2,1,64], index: 11, kind: input, shape index: {}]
  %s12 = inlined_call_operand.vmem [shape: f32[2,64,32], index: 12, kind: input, shape index: {}]
  %s13 = inlined_call_operand.vmem [shape: f32[2,1,32], index: 13, kind: input, shape index: {}]
  %s14 = inlined_call_operand.vmem [shape: f32[2,1,32], index: 14, kind: input, shape index: {}]
  %s15 = inlined_call_operand.vmem [shape: f32[2,1,32], index: 15, kind: input, shape index: {}]
  %s16 = inlined_call_operand.vmem [shape: f32[32,32], index: 16, kind: input, shape index: {}]
  %s17 = inlined_call_operand.vmem [shape: f32[1,32], index: 17, kind: input, shape index: {}]
  %s18 = inlined_call_operand.vmem [shape: f32[32,128], index: 18, kind: input, shape index: {}]
  %s19 = inlined_call_operand.vmem [shape: f32[1,128], index: 19, kind: input, shape index: {}]
  %s20 = inlined_call_operand.vmem [shape: f32[16,128], index: 20, kind: output, shape index: {}]
  %s21 = sld [smem:[#allocation0]]
  $region90: #{inner_bert_classification_forward.1} parent=0
    _
  %s23 = ssub.s32 1, %s21
  %s24 = scalar_select 0, %s23, %s21
  // Predicated region
  $region2: #{inner_bert_classification_forward.1} parent=0 // pred_check
    _
  $region3: #{inner_bert_classification_forward.1} parent=0 // pred_check_branch
    %26 = sbr.rel (0) target = $region5
  $region4: #{inner_bert_classification_forward.1} parent=0 // pred_region
    _
  $region5: #{inner_bert_classification_forward.1} parent=0 // pred_fallthru
    _
  // Predicated region
  $region6: #{inner_bert_classification_forward.1} parent=0 // pred_check
    _
  $region7: #{inner_bert_classification_forward.1} parent=0 // pred_check_branch
    %28 = sbr.rel (0) target = $region9
  $region8: #{inner_bert_classification_forward.1} parent=0 // pred_region
    _
  $region9: #{inner_bert_classification_forward.1} parent=0 // pred_fallthru
    _
  // Predicated region
  $region10: #{inner_bert_classification_forward.1} parent=0 // pred_check
    _
  $region11: #{inner_bert_classification_forward.1} parent=0 // pred_check_branch
    %30 = sbr.rel (0) target = $region13
  $region12: #{inner_bert_classification_forward.1} parent=0 // pred_region
    _
  $region13: #{inner_bert_classification_forward.1} parent=0 // pred_fallthru
    _
  // Predicated region
  $region14: #{inner_bert_classification_forward.1} parent=0 // pred_check
    _
  $region15: #{inner_bert_classification_forward.1} parent=0 // pred_check_branch
    %32 = sbr.rel (0) target = $region17
  $region16: #{inner_bert_classification_forward.1} parent=0 // pred_region
    _
  $region17: #{inner_bert_classification_forward.1} parent=0 // pred_fallthru
    _
  // Predicated region
  $region18: #{inner_bert_classification_forward.1} parent=0 // pred_check
    _
  $region19: #{inner_bert_classification_forward.1} parent=0 // pred_check_branch
    %34 = sbr.rel (0) target = $region21
  $region20: #{inner_bert_classification_forward.1} parent=0 // pred_region
    _
  $region21: #{inner_bert_classification_forward.1} parent=0 // pred_fallthru
    _
  // Predicated region
  $region22: #{inner_bert_classification_forward.1} parent=0 // pred_check
    _
  $region23: #{inner_bert_classification_forward.1} parent=0 // pred_check_branch
    %36 = sbr.rel (0) target = $region25
  $region24: #{inner_bert_classification_forward.1} parent=0 // pred_region
    _
  $region25: #{inner_bert_classification_forward.1} parent=0 // pred_fallthru
    _
  // Predicated region
  $region26: #{inner_bert_classification_forward.1} parent=0 // pred_check
    _
  $region27: #{inner_bert_classification_forward.1} parent=0 // pred_check_branch
    %38 = sbr.rel (0) target = $region29
  $region28: #{inner_bert_classification_forward.1} parent=0 // pred_region
    _
  $region29: #{inner_bert_classification_forward.1} parent=0 // pred_fallthru
    _
  // Predicated region
  $region30: #{inner_bert_classification_forward.1} parent=0 // pred_check
    _
  $region31: #{inner_bert_classification_forward.1} parent=0 // pred_check_branch
    %40 = sbr.rel (0) target = $region33
  $region32: #{inner_bert_classification_forward.1} parent=0 // pred_region
    _
  $region33: #{inner_bert_classification_forward.1} parent=0 // pred_fallthru
    _
  // Predicated region
  $region34: #{inner_bert_classification_forward.1} parent=0 // pred_check
    _
  $region35: #{inner_bert_classification_forward.1} parent=0 // pred_check_branch
    %42 = sbr.rel (0) target = $region37
  $region36: #{inner_bert_classification_forward.1} parent=0 // pred_region
    _
  $region37: #{inner_bert_classification_forward.1} parent=0 // pred_fallthru
    _
  // Predicated region
  $region38: #{inner_bert_classification_forward.1} parent=0 // pred_check
    _
  $region39: #{inner_bert_classification_forward.1} parent=0 // pred_check_branch
    %44 = sbr.rel (0) target = $region41
  $region40: #{inner_bert_classification_forward.1} parent=0 // pred_region
    _
  $region41: #{inner_bert_classification_forward.1} parent=0 // pred_fallthru
    _
  // Predicated region
  $region42: #{inner_bert_classification_forward.1} parent=0 // pred_check
    _
  $region43: #{inner_bert_classification_forward.1} parent=0 // pred_check_branch
    %46 = sbr.rel (0) target = $region45
  $region44: #{inner_bert_classification_forward.1} parent=0 // pred_region
    _
  $region45: #{inner_bert_classification_forward.1} parent=0 // pred_fallthru
    _
  // Predicated region
  $region46: #{inner_bert_classification_forward.1} parent=0 // pred_check
    _
  $region47: #{inner_bert_classification_forward.1} parent=0 // pred_check_branch
    %48 = sbr.rel (0) target = $region49
  $region48: #{inner_bert_classification_forward.1} parent=0 // pred_region
    _
  $region49: #{inner_bert_classification_forward.1} parent=0 // pred_fallthru
    _
  // Predicated region
  $region50: #{inner_bert_classification_forward.1} parent=0 // pred_check
    _
  $region51: #{inner_bert_classification_forward.1} parent=0 // pred_check_branch
    %50 = sbr.rel (0) target = $region53
  $region52: #{inner_bert_classification_forward.1} parent=0 // pred_region
    _
  $region53: #{inner_bert_classification_forward.1} parent=0 // pred_fallthru
    _
  // Predicated region
  $region54: #{inner_bert_classification_forward.1} parent=0 // pred_check
    _
  $region55: #{inner_bert_classification_forward.1} parent=0 // pred_check_branch
    %52 = sbr.rel (0) target = $region57
  $region56: #{inner_bert_classification_forward.1} parent=0 // pred_region
    _
  $region57: #{inner_bert_classification_forward.1} parent=0 // pred_fallthru
    _
  // Predicated region
  $region58: #{inner_bert_classification_forward.1} parent=0 // pred_check
    _
  $region59: #{inner_bert_classification_forward.1} parent=0 // pred_check_branch
    %54 = sbr.rel (0) target = $region61
  $region60: #{inner_bert_classification_forward.1} parent=0 // pred_region
    _
  $region61: #{inner_bert_classification_forward.1} parent=0 // pred_fallthru
    _
  // Predicated region
  $region62: #{inner_bert_classification_forward.1} parent=0 // pred_check
    _
  $region63: #{inner_bert_classification_forward.1} parent=0 // pred_check_branch
    %56 = sbr.rel (0) target = $region65
  $region64: #{inner_bert_classification_forward.1} parent=0 // pred_region
    _
  $region65: #{inner_bert_classification_forward.1} parent=0 // pred_fallthru
    _
  // Predicated region
  $region66: #{inner_bert_classification_forward.1} parent=0 // pred_check
    _
  $region67: #{inner_bert_classification_forward.1} parent=0 // pred_check_branch
    %58 = sbr.rel (0) target = $region69
  $region68: #{inner_bert_classification_forward.1} parent=0 // pred_region
    _
  $region69: #{inner_bert_classification_forward.1} parent=0 // pred_fallthru
    _
  // Predicated region
  $region70: #{inner_bert_classification_forward.1} parent=0 // pred_check
    _
  $region71: #{inner_bert_classification_forward.1} parent=0 // pred_check_branch
    %60 = sbr.rel (0) target = $region73
  $region72: #{inner_bert_classification_forward.1} parent=0 // pred_region
    _
  $region73: #{inner_bert_classification_forward.1} parent=0 // pred_fallthru
    _
  // Predicated region
  $region74: #{inner_bert_classification_forward.1} parent=0 // pred_check
    _
  $region75: #{inner_bert_classification_forward.1} parent=0 // pred_check_branch
    %62 = sbr.rel (0) target = $region77
  $region76: #{inner_bert_classification_forward.1} parent=0 // pred_region
    _
  $region77: #{inner_bert_classification_forward.1} parent=0 // pred_fallthru
    _
  // Predicated region
  $region78: #{inner_bert_classification_forward.1} parent=0 // pred_check
    _
  $region79: #{inner_bert_classification_forward.1} parent=0 // pred_check_branch
    %64 = sbr.rel (0) target = $region81
  $region80: #{inner_bert_classification_forward.1} parent=0 // pred_region
    _
  $region81: #{inner_bert_classification_forward.1} parent=0 // pred_fallthru
    _
  %v65 = vld [vmem:[%s0] sm:$0xff]
  %v66 = vld [vmem:[%s0 + $0x8] sm:$0xff]
  %v67 = vld [vmem:[%s2] sm:$0x1]
  %v68 = vld [vmem:[%s3] sm:$0x1]
  %vm69 = vcmask 261120
  %v70 = vsel %vm69, %v65, 0.0
  %71 = vadd.xlane.f32.xlu0 %v70
  %v72 = vpop.xlane.xlu0 %71
  %v73 = vsel %vm69, %v66, 0.0
  %74 = vadd.xlane.f32.xlu0 %v73
  %v75 = vpop.xlane.xlu0 %74
  %v76 = vrcp.pop 32.0
  %v77 = vmul.f32 32.0, %v76
  %v78 = vsub.f32 1.0, %v77
  %v79 = vmul.f32 %v76, %v78
  %v80 = vadd.f32 %v76, %v79
  %vm81 = vweird.f32 %v76
  %v82 = vsel %vm81, %v76, %v80
  %v83 = vmul.f32 %v72, %v82
  %v84 = vmul.f32 %v75, %v82
  %v85 = vsub.f32 %v65, %v83
  %v86 = vsub.f32 %v66, %v84
  %v87 = vmul.f32 %v85, %v85
  %v88 = vmul.f32 %v86, %v86
  %v89 = vsel %vm69, %v87, 0.0
  %90 = vadd.xlane.f32.xlu0 %v89
  %v91 = vpop.xlane.xlu0 %90
  %v92 = vsel %vm69, %v88, 0.0
  %93 = vadd.xlane.f32.xlu0 %v92
  %v94 = vpop.xlane.xlu0 %93
  %v95 = vmul.f32 %v91, %v82
  %v96 = vmul.f32 %v94, %v82
  %v97 = vadd.f32 %v95, 1e-12
  %v98 = vadd.f32 %v96, 1e-12
  %v99 = vrsqrt.pop %v97
  %v100 = vmul.f32 %v99, %v97
  %v101 = vmul.f32 %v100, %v99
  %v102 = vmul.f32 0.5, %v101
  %v103 = vsub.f32 1.5, %v102
  %v104 = vmul.f32 %v99, %v103
  %vm105 = vweird.f32 %v97
  %vm106 = vweird.f32 %v99
  %vm107 = vmor %vm105, %vm106
  %v108 = vsel %vm107, %v99, %v104
  %v109 = vrsqrt.pop %v98
  %v110 = vmul.f32 %v109, %v98
  %v111 = vmul.f32 %v110, %v109
  %v112 = vmul.f32 0.5, %v111
  %v113 = vsub.f32 1.5, %v112
  %v114 = vmul.f32 %v109, %v113
  %vm115 = vweird.f32 %v98
  %vm116 = vweird.f32 %v109
  %vm117 = vmor %vm115, %vm116
  %v118 = vsel %vm117, %v109, %v114
  %v119 = vmul.f32 %v85, %v108
  %v120 = vmul.f32 %v86, %v118
  %v122 = vperm.slane %v67, 0
  %v124 = vmul.f32 %v119, %v122
  %v125 = vmul.f32 %v120, %v122
  %v127 = vperm.slane %v68, 0
  %v129 = vadd.f32 %v124, %v127
  %v130 = vadd.f32 %v125, %v127
  %v131 = vld [vmem:[%s1] sm:$0x3]
  %v132 = vld [vmem:[%s4] sm:$0xff]
  %v133 = vld [vmem:[%s4 + $0x8] sm:$0xff]
  %v134 = vld [vmem:[%s4 + $0x10] sm:$0xff]
  %v135 = vld [vmem:[%s4 + $0x18] sm:$0xff]
  %v136 = vld [vmem:[%s5] sm:$0x1]
  %v138 = vperm.slane %v136, 0
  %v141 = vsel %vm69, %v129, 0
  %v144 = vsel %vm69, %v130, 0
  %146 = vmatpush.msra.mxu0 0.0
  %147 = vmatpush.msra.mxu0 0.0
  %148 = vmatpush.msra.mxu0 0.0
  %149 = vmatpush.msra.mxu0 0.0
  %150 = vmatpush.msra.mxu0 0.0
  %151 = vmatpush.msra.mxu0 0.0
  %152 = vmatpush.msra.mxu0 0.0
  %153 = vmatpush.msra.mxu0 0.0
  %154 = vmatpush.msra.mxu0 0.0
  %155 = vmatpush.msra.mxu0 0.0
  %156 = vmatpush.msra.mxu0 0.0
  %157 = vmatpush.msra.mxu0 0.0
  %158 = vmatpush.msra.mxu0 %v135
  %159 = vmatpush.msra.mxu0 %v134
  %160 = vmatpush.msra.mxu0 %v133
  %161 = vmatpush.msra.mxu0 %v132
  %162 = vmatmul.f32.gmra.mxu0 %v141
  %v163 = vpop.f32.mrf.mxu0
  %v164 = vadd.f32 %v138, %v163
  %165 = vmatmul.f32.gmra.mxu0 %v144
  %v166 = vpop.f32.mrf.mxu0
  %v167 = vadd.f32 %v138, %v166
  %168 = vdwg.mxu0
  %170 = vrot.lane.b32.xlu0 %v164, 96
  %v171 = vpop.permute.xlu0 %170
  %vm172 = vcmask 130048
  %v173 = vsel %vm172, %v164, 0
  %v175 = vsel %vm172, %v171, 0
  %177 = vmatpush.xpose.msra.mxu0 0.0
  %178 = vmatpush.xpose.msra.mxu0 0.0
  %179 = vmatpush.xpose.msra.mxu0 0.0
  %180 = vmatpush.xpose.msra.mxu0 0.0
  %181 = vmatpush.xpose.msra.mxu0 0.0
  %182 = vmatpush.xpose.msra.mxu0 0.0
  %183 = vmatpush.xpose.msra.mxu0 0.0
  %184 = vmatpush.xpose.msra.mxu0 0.0
  %185 = vmatpush.xpose.msra.mxu0 0.0
  %186 = vmatpush.xpose.msra.mxu0 0.0
  %187 = vmatpush.xpose.msra.mxu0 0.0
  %188 = vmatpush.xpose.msra.mxu0 0.0
  %189 = vmatpush.xpose.msra.mxu0 0.0
  %190 = vmatpush.xpose.msra.mxu0 0.0
  %191 = vmatpush.xpose.msra.mxu0 0.0
  %192 = vmatpush.xpose.msra.mxu0 %v175
  %193 = vmatmul.f32.gmra.mxu0 %v173
  %v194 = vpop.f32.mrf.mxu0
  %v195 = vadd.f32 0.0, %v194
  %196 = vdwg.mxu0
  %v197 = vmul.f32 %v195, 0.25
  %v198 = vperm.slane %v131, 0
  %v199 = vadd.f32 %v197, %v198
  %vm200 = vcmask 64512
  %v201 = vsel %vm200, %v199, -inf
  %202 = vmax.xlane.f32.xlu0 %v201
  %v203 = vpop.xlane.xlu0 %202
  %v204 = vsub.f32 %v199, %v203
  %v205 = vmul.f32 %v204, 1.442695
  %v206 = vpow.pop %v205
  %v207 = vsel %vm200, %v206, 0.0
  %208 = vadd.xlane.f32.xlu0 %v207
  %v209 = vpop.xlane.xlu0 %208
  %v210 = vrcp.pop %v209
  %v211 = vmul.f32 %v206, %v210
  %212 = vrot.lane.b32.xlu0 %v164, 64
  %v213 = vpop.permute.xlu0 %212
  %v216 = vsel %vm200, %v211, 0
  %218 = vmatpush.msra.mxu0 0.0
  %219 = vmatpush.msra.mxu0 0.0
  %220 = vmatpush.msra.mxu0 0.0
  %221 = vmatpush.msra.mxu0 0.0
  %222 = vmatpush.msra.mxu0 0.0
  %223 = vmatpush.msra.mxu0 0.0
  %224 = vmatpush.msra.mxu0 0.0
  %225 = vmatpush.msra.mxu0 0.0
  %226 = vmatpush.msra.mxu0 0.0
  %227 = vmatpush.msra.mxu0 0.0
  %228 = vmatpush.msra.mxu0 0.0
  %229 = vmatpush.msra.mxu0 0.0
  %230 = vmatpush.msra.mxu0 0.0
  %231 = vmatpush.msra.mxu0 0.0
  %232 = vmatpush.msra.mxu0 0.0
  %233 = vmatpush.msra.mxu0 %v213
  %234 = vmatmul.f32.gmra.mxu0 %v216
  %v235 = vpop.f32.mrf.mxu0
  %v236 = vadd.f32 0.0, %v235
  %237 = vdwg.mxu0
  %238 = vst.msk [vmem:[#allocation2] sm:$0xff] %vm172, %v236
  %239 = vrot.lane.b32.xlu0 %v164, 112
  %v240 = vpop.permute.xlu0 %239
  %241 = vrot.lane.b32.xlu0 %v164, 80
  %v242 = vpop.permute.xlu0 %241
  %v243 = vsel %vm172, %v240, 0
  %v245 = vsel %vm172, %v242, 0
  %247 = vmatpush.xpose.msra.mxu0 0.0
  %248 = vmatpush.xpose.msra.mxu0 0.0
  %249 = vmatpush.xpose.msra.mxu0 0.0
  %250 = vmatpush.xpose.msra.mxu0 0.0
  %251 = vmatpush.xpose.msra.mxu0 0.0
  %252 = vmatpush.xpose.msra.mxu0 0.0
  %253 = vmatpush.xpose.msra.mxu0 0.0
  %254 = vmatpush.xpose.msra.mxu0 0.0
  %255 = vmatpush.xpose.msra.mxu0 0.0
  %256 = vmatpush.xpose.msra.mxu0 0.0
  %257 = vmatpush.xpose.msra.mxu0 0.0
  %258 = vmatpush.xpose.msra.mxu0 0.0
  %259 = vmatpush.xpose.msra.mxu0 0.0
  %260 = vmatpush.xpose.msra.mxu0 0.0
  %261 = vmatpush.xpose.msra.mxu0 0.0
  %262 = vmatpush.xpose.msra.mxu0 %v245
  %263 = vmatmul.f32.gmra.mxu0 %v243
  %v264 = vpop.f32.mrf.mxu0
  %v265 = vadd.f32 0.0, %v264
  %266 = vdwg.mxu0
  %v267 = vmul.f32 %v265, 0.25
  %v268 = vadd.f32 %v267, %v198
  %v269 = vsel %vm200, %v268, -inf
  %270 = vmax.xlane.f32.xlu0 %v269
  %v271 = vpop.xlane.xlu0 %270
  %v272 = vsub.f32 %v268, %v271
  %v273 = vmul.f32 %v272, 1.442695
  %v274 = vpow.pop %v273
  %v275 = vsel %vm200, %v274, 0.0
  %276 = vadd.xlane.f32.xlu0 %v275
  %v277 = vpop.xlane.xlu0 %276
  %v278 = vrcp.pop %v277
  %v279 = vmul.f32 %v274, %v278
  %280 = vrot.lane.b32.xlu0 %v164, 48
  %v281 = vpop.permute.xlu0 %280
  %v284 = vsel %vm200, %v279, 0
  %286 = vmatpush.msra.mxu0 0.0
  %287 = vmatpush.msra.mxu0 0.0
  %288 = vmatpush.msra.mxu0 0.0
  %289 = vmatpush.msra.mxu0 0.0
  %290 = vmatpush.msra.mxu0 0.0
  %291 = vmatpush.msra.mxu0 0.0
  %292 = vmatpush.msra.mxu0 0.0
  %293 = vmatpush.msra.mxu0 0.0
  %294 = vmatpush.msra.mxu0 0.0
  %295 = vmatpush.msra.mxu0 0.0
  %296 = vmatpush.msra.mxu0 0.0
  %297 = vmatpush.msra.mxu0 0.0
  %298 = vmatpush.msra.mxu0 0.0
  %299 = vmatpush.msra.mxu0 0.0
  %300 = vmatpush.msra.mxu0 0.0
  %301 = vmatpush.msra.mxu0 %v281
  %302 = vmatmul.f32.gmra.mxu0 %v284
  %v303 = vpop.f32.mrf.mxu0
  %v304 = vadd.f32 0.0, %v303
  %305 = vdwg.mxu0
  %307 = vrot.lane.b32.xlu0 %v304, 16
  %v308 = vpop.permute.xlu0 %307
  %vm310 = vcmask 261248
  %311 = vst.msk [vmem:[#allocation2] sm:$0xff] %vm310, %v308
  %313 = vrot.lane.b32.xlu0 %v167, 96
  %v314 = vpop.permute.xlu0 %313
  %v315 = vsel %vm172, %v167, 0
  %v317 = vsel %vm172, %v314, 0
  %319 = vmatpush.xpose.msra.mxu0 0.0
  %320 = vmatpush.xpose.msra.mxu0 0.0
  %321 = vmatpush.xpose.msra.mxu0 0.0
  %322 = vmatpush.xpose.msra.mxu0 0.0
  %323 = vmatpush.xpose.msra.mxu0 0.0
  %324 = vmatpush.xpose.msra.mxu0 0.0
  %325 = vmatpush.xpose.msra.mxu0 0.0
  %326 = vmatpush.xpose.msra.mxu0 0.0
  %327 = vmatpush.xpose.msra.mxu0 0.0
  %328 = vmatpush.xpose.msra.mxu0 0.0
  %329 = vmatpush.xpose.msra.mxu0 0.0
  %330 = vmatpush.xpose.msra.mxu0 0.0
  %331 = vmatpush.xpose.msra.mxu0 0.0
  %332 = vmatpush.xpose.msra.mxu0 0.0
  %333 = vmatpush.xpose.msra.mxu0 0.0
  %334 = vmatpush.xpose.msra.mxu0 %v317
  %335 = vmatmul.f32.gmra.mxu0 %v315
  %v336 = vpop.f32.mrf.mxu0
  %v337 = vadd.f32 0.0, %v336
  %338 = vdwg.mxu0
  %v339 = vmul.f32 %v337, 0.25
  %v340 = vperm.slane %v131, 1
  %v341 = vadd.f32 %v339, %v340
  %v342 = vsel %vm200, %v341, -inf
  %343 = vmax.xlane.f32.xlu0 %v342
  %v344 = vpop.xlane.xlu0 %343
  %v345 = vsub.f32 %v341, %v344
  %v346 = vmul.f32 %v345, 1.442695
  %v347 = vpow.pop %v346
  %v348 = vsel %vm200, %v347, 0.0
  %349 = vadd.xlane.f32.xlu0 %v348
  %v350 = vpop.xlane.xlu0 %349
  %v351 = vrcp.pop %v350
  %v352 = vmul.f32 %v347, %v351
  %353 = vrot.lane.b32.xlu0 %v167, 64
  %v354 = vpop.permute.xlu0 %353
  %v357 = vsel %vm200, %v352, 0
  %359 = vmatpush.msra.mxu0 0.0
  %360 = vmatpush.msra.mxu0 0.0
  %361 = vmatpush.msra.mxu0 0.0
  %362 = vmatpush.msra.mxu0 0.0
  %363 = vmatpush.msra.mxu0 0.0
  %364 = vmatpush.msra.mxu0 0.0
  %365 = vmatpush.msra.mxu0 0.0
  %366 = vmatpush.msra.mxu0 0.0
  %367 = vmatpush.msra.mxu0 0.0
  %368 = vmatpush.msra.mxu0 0.0
  %369 = vmatpush.msra.mxu0 0.0
  %370 = vmatpush.msra.mxu0 0.0
  %371 = vmatpush.msra.mxu0 0.0
  %372 = vmatpush.msra.mxu0 0.0
  %373 = vmatpush.msra.mxu0 0.0
  %374 = vmatpush.msra.mxu0 %v354
  %375 = vmatmul.f32.gmra.mxu0 %v357
  %v376 = vpop.f32.mrf.mxu0
  %v377 = vadd.f32 0.0, %v376
  %378 = vdwg.mxu0
  %379 = vst.msk [vmem:[#allocation2 + $0x8] sm:$0xff] %vm172, %v377
  %380 = vrot.lane.b32.xlu0 %v167, 112
  %v381 = vpop.permute.xlu0 %380
  %382 = vrot.lane.b32.xlu0 %v167, 80
  %v383 = vpop.permute.xlu0 %382
  %v384 = vsel %vm172, %v381, 0
  %v386 = vsel %vm172, %v383, 0
  %388 = vmatpush.xpose.msra.mxu0 0.0
  %389 = vmatpush.xpose.msra.mxu0 0.0
  %390 = vmatpush.xpose.msra.mxu0 0.0
  %391 = vmatpush.xpose.msra.mxu0 0.0
  %392 = vmatpush.xpose.msra.mxu0 0.0
  %393 = vmatpush.xpose.msra.mxu0 0.0
  %394 = vmatpush.xpose.msra.mxu0 0.0
  %395 = vmatpush.xpose.msra.mxu0 0.0
  %396 = vmatpush.xpose.msra.mxu0 0.0
  %397 = vmatpush.xpose.msra.mxu0 0.0
  %398 = vmatpush.xpose.msra.mxu0 0.0
  %399 = vmatpush.xpose.msra.mxu0 0.0
  %400 = vmatpush.xpose.msra.mxu0 0.0
  %401 = vmatpush.xpose.msra.mxu0 0.0
  %402 = vmatpush.xpose.msra.mxu0 0.0
  %403 = vmatpush.xpose.msra.mxu0 %v386
  %404 = vmatmul.f32.gmra.mxu0 %v384
  %v405 = vpop.f32.mrf.mxu0
  %v406 = vadd.f32 0.0, %v405
  %407 = vdwg.mxu0
  %v408 = vmul.f32 %v406, 0.25
  %v409 = vadd.f32 %v408, %v340
  %v410 = vsel %vm200, %v409, -inf
  %411 = vmax.xlane.f32.xlu0 %v410
  %v412 = vpop.xlane.xlu0 %411
  %v413 = vsub.f32 %v409, %v412
  %v414 = vmul.f32 %v413, 1.442695
  %v415 = vpow.pop %v414
  %v416 = vsel %vm200, %v415, 0.0
  %417 = vadd.xlane.f32.xlu0 %v416
  %v418 = vpop.xlane.xlu0 %417
  %v419 = vrcp.pop %v418
  %v420 = vmul.f32 %v415, %v419
  %421 = vrot.lane.b32.xlu0 %v167, 48
  %v422 = vpop.permute.xlu0 %421
  %v425 = vsel %vm200, %v420, 0
  %427 = vmatpush.msra.mxu0 0.0
  %428 = vmatpush.msra.mxu0 0.0
  %429 = vmatpush.msra.mxu0 0.0
  %430 = vmatpush.msra.mxu0 0.0
  %431 = vmatpush.msra.mxu0 0.0
  %432 = vmatpush.msra.mxu0 0.0
  %433 = vmatpush.msra.mxu0 0.0
  %434 = vmatpush.msra.mxu0 0.0
  %435 = vmatpush.msra.mxu0 0.0
  %436 = vmatpush.msra.mxu0 0.0
  %437 = vmatpush.msra.mxu0 0.0
  %438 = vmatpush.msra.mxu0 0.0
  %439 = vmatpush.msra.mxu0 0.0
  %440 = vmatpush.msra.mxu0 0.0
  %441 = vmatpush.msra.mxu0 0.0
  %442 = vmatpush.msra.mxu0 %v422
  %443 = vmatmul.f32.gmra.mxu0 %v425
  %v444 = vpop.f32.mrf.mxu0
  %v445 = vadd.f32 0.0, %v444
  %446 = vdwg.mxu0
  %448 = vrot.lane.b32.xlu0 %v445, 16
  %v449 = vpop.permute.xlu0 %448
  %451 = vst.msk [vmem:[#allocation2 + $0x8] sm:$0xff] %vm310, %v449
  %v452 = vld [vmem:[#allocation2] sm:$0xff]
  %v453 = vld [vmem:[#allocation2 + $0x8] sm:$0xff]
  %v454 = vld [vmem:[%s6] sm:$0xff]
  %v455 = vld [vmem:[%s6 + $0x8] sm:$0xff]
  %v456 = vld [vmem:[%s6 + $0x10] sm:$0xff]
  %v457 = vld [vmem:[%s6 + $0x18] sm:$0xff]
  %v458 = vld [vmem:[%s7] sm:$0x1]
  %v460 = vperm.slane %v458, 0
  %v463 = vsel %vm69, %v452, 0
  %v466 = vsel %vm69, %v453, 0
  %468 = vmatpush.msra.mxu0 0.0
  %469 = vmatpush.msra.mxu0 0.0
  %470 = vmatpush.msra.mxu0 0.0
  %471 = vmatpush.msra.mxu0 0.0
  %472 = vmatpush.msra.mxu0 0.0
  %473 = vmatpush.msra.mxu0 0.0
  %474 = vmatpush.msra.mxu0 0.0
  %475 = vmatpush.msra.mxu0 0.0
  %476 = vmatpush.msra.mxu0 0.0
  %477 = vmatpush.msra.mxu0 0.0
  %478 = vmatpush.msra.mxu0 0.0
  %479 = vmatpush.msra.mxu0 0.0
  %480 = vmatpush.msra.mxu0 %v457
  %481 = vmatpush.msra.mxu0 %v456
  %482 = vmatpush.msra.mxu0 %v455
  %483 = vmatpush.msra.mxu0 %v454
  %484 = vmatmul.f32.gmra.mxu0 %v463
  %v485 = vpop.f32.mrf.mxu0
  %v486 = vadd.f32 %v460, %v485
  %487 = vmatmul.f32.gmra.mxu0 %v466
  %v488 = vpop.f32.mrf.mxu0
  %v489 = vadd.f32 %v460, %v488
  %490 = vdwg.mxu0
  %v491 = vadd.f32 %v129, %v486
  %v492 = vadd.f32 %v130, %v489
  %v493 = vld [vmem:[%s8] sm:$0x1]
  %v494 = vld [vmem:[%s9] sm:$0x1]
  %v495 = vsel %vm69, %v491, 0.0
  %496 = vadd.xlane.f32.xlu0 %v495
  %v497 = vpop.xlane.xlu0 %496
  %v498 = vsel %vm69, %v492, 0.0
  %499 = vadd.xlane.f32.xlu0 %v498
  %v500 = vpop.xlane.xlu0 %499
  %v501 = vmul.f32 %v497, %v82
  %v502 = vmul.f32 %v500, %v82
  %v503 = vsub.f32 %v491, %v501
  %v504 = vsub.f32 %v492, %v502
  %v505 = vmul.f32 %v503, %v503
  %v506 = vmul.f32 %v504, %v504
  %v507 = vsel %vm69, %v505, 0.0
  %508 = vadd.xlane.f32.xlu0 %v507
  %v509 = vpop.xlane.xlu0 %508
  %v510 = vsel %vm69, %v506, 0.0
  %511 = vadd.xlane.f32.xlu0 %v510
  %v512 = vpop.xlane.xlu0 %511
  %v513 = vmul.f32 %v509, %v82
  %v514 = vmul.f32 %v512, %v82
  %v515 = vadd.f32 %v513, 1e-12
  %v516 = vadd.f32 %v514, 1e-12
  %v517 = vrsqrt.pop %v515
  %v518 = vmul.f32 %v517, %v515
  %v519 = vmul.f32 %v518, %v517
  %v520 = vmul.f32 0.5, %v519
  %v521 = vsub.f32 1.5, %v520
  %v522 = vmul.f32 %v517, %v521
  %vm523 = vweird.f32 %v515
  %vm524 = vweird.f32 %v517
  %vm525 = vmor %vm523, %vm524
  %v526 = vsel %vm525, %v517, %v522
  %v527 = vrsqrt.pop %v516
  %v528 = vmul.f32 %v527, %v516
  %v529 = vmul.f32 %v528, %v527
  %v530 = vmul.f32 0.5, %v529
  %v531 = vsub.f32 1.5, %v530
  %v532 = vmul.f32 %v527, %v531
  %vm533 = vweird.f32 %v516
  %vm534 = vweird.f32 %v527
  %vm535 = vmor %vm533, %vm534
  %v536 = vsel %vm535, %v527, %v532
  %v537 = vmul.f32 %v503, %v526
  %v538 = vmul.f32 %v504, %v536
  %v540 = vperm.slane %v493, 0
  %v542 = vmul.f32 %v537, %v540
  %v543 = vmul.f32 %v538, %v540
  %v545 = vperm.slane %v494, 0
  %v547 = vadd.f32 %v542, %v545
  %v548 = vadd.f32 %v543, %v545
  %v549 = vld [vmem:[%s10] sm:$0xff]
  %v550 = vld [vmem:[%s10 + $0x8] sm:$0xff]
  %v551 = vld [vmem:[%s10 + $0x10] sm:$0xff]
  %v552 = vld [vmem:[%s10 + $0x18] sm:$0xff]
  %v553 = vld [vmem:[%s11] sm:$0x1]
  %v555 = vperm.slane %v553, 0
  %v558 = vsel %vm69, %v547, 0
  %v561 = vsel %vm69, %v548, 0
  %563 = vmatpush.msra.mxu0 0.0
  %564 = vmatpush.msra.mxu0 0.0
  %565 = vmatpush.msra.mxu0 0.0
  %566 = vmatpush.msra.mxu0 0.0
  %567 = vmatpush.msra.mxu0 0.0
  %568 = vmatpush.msra.mxu0 0.0
  %569 = vmatpush.msra.mxu0 0.0
  %570 = vmatpush.msra.mxu0 0.0
  %571 = vmatpush.msra.mxu0 0.0
  %572 = vmatpush.msra.mxu0 0.0
  %573 = vmatpush.msra.mxu0 0.0
  %574 = vmatpush.msra.mxu0 0.0
  %575 = vmatpush.msra.mxu0 %v552
  %576 = vmatpush.msra.mxu0 %v551
  %577 = vmatpush.msra.mxu0 %v550
  %578 = vmatpush.msra.mxu0 %v549
  %579 = vmatmul.f32.gmra.mxu0 %v558
  %v580 = vpop.f32.mrf.mxu0
  %v581 = vadd.f32 %v555, %v580
  %582 = vmatmul.f32.gmra.mxu0 %v561
  %v583 = vpop.f32.mrf.mxu0
  %v584 = vadd.f32 %v555, %v583
  %585 = vdwg.mxu0
  %v586 = vmul.f32 %v581, 0.5
  %v587 = vmul.f32 %v584, 0.5
  %v588 = vmul.f32 %v581, 0.70710677
  %v589 = vmul.f32 %v584, 0.70710677
  %v590 = vmul.f32 %v588, %v588
  %v591 = vmin.f32 16.0, %v590
  %v592 = vmul.f32 %v591, 2.1237322e-06
  %v593 = vadd.f32 %v592, 0.00028619796
  %v594 = vmul.f32 %v591, %v593
  %v595 = vadd.f32 %v594, 0.0036580483
  %v596 = vmul.f32 %v591, %v595
  %v597 = vadd.f32 %v596, 0.05243302
  %v598 = vmul.f32 %v591, %v597
  %v599 = vadd.f32 %v598, 0.18741608
  %v600 = vmul.f32 %v591, %v599
  %v601 = vadd.f32 %v600, 1.1283791
  %v602 = vmul.f32 %v588, %v601
  %v603 = vmul.f32 %v591, 3.8918573e-05
  %v604 = vadd.f32 %v603, 0.001143296
  %v605 = vmul.f32 %v591, %v604
  %v606 = vadd.f32 %v605, 0.014752088
  %v607 = vmul.f32 %v591, %v606
  %v608 = vadd.f32 %v607, 0.112945676
  %v609 = vmul.f32 %v591, %v608
  %v610 = vadd.f32 %v609, 0.4994258
  %v611 = vmul.f32 %v591, %v610
  %v612 = vadd.f32 %v611, 1.0
  %v613 = vrcp.pop %v612
  %v614 = vmul.f32 %v612, %v613
  %v615 = vsub.f32 1.0, %v614
  %v616 = vmul.f32 %v613, %v615
  %v617 = vadd.f32 %v613, %v616
  %vm618 = vweird.f32 %v612
  %vm619 = vweird.f32 %v613
  %vm620 = vmor %vm618, %vm619
  %v621 = vsel %vm620, %v613, %v617
  %v622 = vand.u32 2147483647, %v612
  %vm623 = vcmp.eq.f32.partialorder %v622, 8.507059e+37
  %v624 = vand.u32 %v612, 2147483648
  %v625 = vor.u32 1.1754944e-38, %v624
  %v626 = vsel %vm623, %v625, %v621
  %v627 = vmul.f32 %v602, %v626
  %v628 = vmin.f32 %v627, 1.0
  %v629 = vmax.f32 %v628, -1.0
  %v630 = vmul.f32 %v589, %v589
  %v631 = vmin.f32 16.0, %v630
  %v632 = vmul.f32 %v631, 2.1237322e-06
  %v633 = vadd.f32 %v632, 0.00028619796
  %v634 = vmul.f32 %v631, %v633
  %v635 = vadd.f32 %v634, 0.0036580483
  %v636 = vmul.f32 %v631, %v635
  %v637 = vadd.f32 %v636, 0.05243302
  %v638 = vmul.f32 %v631, %v637
  %v639 = vadd.f32 %v638, 0.18741608
  %v640 = vmul.f32 %v631, %v639
  %v641 = vadd.f32 %v640, 1.1283791
  %v642 = vmul.f32 %v589, %v641
  %v643 = vmul.f32 %v631, 3.8918573e-05
  %v644 = vadd.f32 %v643, 0.001143296
  %v645 = vmul.f32 %v631, %v644
  %v646 = vadd.f32 %v645, 0.014752088
  %v647 = vmul.f32 %v631, %v646
  %v648 = vadd.f32 %v647, 0.112945676
  %v649 = vmul.f32 %v631, %v648
  %v650 = vadd.f32 %v649, 0.4994258
  %v651 = vmul.f32 %v631, %v650
  %v652 = vadd.f32 %v651, 1.0
  %v653 = vrcp.pop %v652
  %v654 = vmul.f32 %v652, %v653
  %v655 = vsub.f32 1.0, %v654
  %v656 = vmul.f32 %v653, %v655
  %v657 = vadd.f32 %v653, %v656
  %vm658 = vweird.f32 %v652
  %vm659 = vweird.f32 %v653
  %vm660 = vmor %vm658, %vm659
  %v661 = vsel %vm660, %v653, %v657
  %v662 = vand.u32 2147483647, %v652
  %vm663 = vcmp.eq.f32.partialorder %v662, 8.507059e+37
  %v664 = vand.u32 %v652, 2147483648
  %v665 = vor.u32 1.1754944e-38, %v664
  %v666 = vsel %vm663, %v665, %v661
  %v667 = vmul.f32 %v642, %v666
  %v668 = vmin.f32 %v667, 1.0
  %v669 = vmax.f32 %v668, -1.0
  %v670 = vadd.f32 %v629, 1.0
  %v671 = vadd.f32 %v669, 1.0
  %v672 = vmul.f32 %v586, %v670
  %v673 = vmul.f32 %v587, %v671
  %v674 = vld [vmem:[%s12] sm:$0xff]
  %v675 = vld [vmem:[%s12 + $0x8] sm:$0xff]
  %v676 = vld [vmem:[%s12 + $0x10] sm:$0xff]
  %v677 = vld [vmem:[%s12 + $0x18] sm:$0xff]
  %v678 = vld [vmem:[%s12 + $0x20] sm:$0xff]
  %v679 = vld [vmem:[%s12 + $0x28] sm:$0xff]
  %v680 = vld [vmem:[%s12 + $0x30] sm:$0xff]
  %v681 = vld [vmem:[%s12 + $0x38] sm:$0xff]
  %v682 = vld [vmem:[%s13] sm:$0x1]
  %v684 = vperm.slane %v682, 0
  %vm686 = vcmask 523264
  %v688 = vsel %vm686, %v672, 0
  %v691 = vsel %vm686, %v673, 0
  %693 = vmatpush.msra.mxu0 0.0
  %694 = vmatpush.msra.mxu0 0.0
  %695 = vmatpush.msra.mxu0 0.0
  %696 = vmatpush.msra.mxu0 0.0
  %697 = vmatpush.msra.mxu0 0.0
  %698 = vmatpush.msra.mxu0 0.0
  %699 = vmatpush.msra.mxu0 0.0
  %700 = vmatpush.msra.mxu0 0.0
  %701 = vmatpush.msra.mxu0 %v681
  %702 = vmatpush.msra.mxu0 %v680
  %703 = vmatpush.msra.mxu0 %v679
  %704 = vmatpush.msra.mxu0 %v678
  %705 = vmatpush.msra.mxu0 %v677
  %706 = vmatpush.msra.mxu0 %v676
  %707 = vmatpush.msra.mxu0 %v675
  %708 = vmatpush.msra.mxu0 %v674
  %709 = vmatmul.f32.gmra.mxu0 %v688
  %v710 = vpop.f32.mrf.mxu0
  %v711 = vadd.f32 %v684, %v710
  %712 = vmatmul.f32.gmra.mxu0 %v691
  %v713 = vpop.f32.mrf.mxu0
  %v714 = vadd.f32 %v684, %v713
  %715 = vdwg.mxu0
  %v716 = vadd.f32 %v547, %v711
  %v717 = vadd.f32 %v548, %v714
  %v718 = vld [vmem:[%s14] sm:$0x1]
  %v719 = vld [vmem:[%s15] sm:$0x1]
  %v720 = vsel %vm69, %v716, 0.0
  %721 = vadd.xlane.f32.xlu0 %v720
  %v722 = vpop.xlane.xlu0 %721
  %v723 = vsel %vm69, %v717, 0.0
  %724 = vadd.xlane.f32.xlu0 %v723
  %v725 = vpop.xlane.xlu0 %724
  %v726 = vmul.f32 %v722, %v82
  %v727 = vmul.f32 %v725, %v82
  %v728 = vsub.f32 %v716, %v726
  %v729 = vsub.f32 %v717, %v727
  %v730 = vmul.f32 %v728, %v728
  %v731 = vmul.f32 %v729, %v729
  %v732 = vsel %vm69, %v730, 0.0
  %733 = vadd.xlane.f32.xlu0 %v732
  %v734 = vpop.xlane.xlu0 %733
  %v735 = vsel %vm69, %v731, 0.0
  %736 = vadd.xlane.f32.xlu0 %v735
  %v737 = vpop.xlane.xlu0 %736
  %v738 = vmul.f32 %v734, %v82
  %v739 = vmul.f32 %v737, %v82
  %v740 = vadd.f32 %v738, 1e-12
  %v741 = vadd.f32 %v739, 1e-12
  %v742 = vrsqrt.pop %v740
  %v743 = vmul.f32 %v742, %v740
  %v744 = vmul.f32 %v743, %v742
  %v745 = vmul.f32 0.5, %v744
  %v746 = vsub.f32 1.5, %v745
  %v747 = vmul.f32 %v742, %v746
  %vm748 = vweird.f32 %v740
  %vm749 = vweird.f32 %v742
  %vm750 = vmor %vm748, %vm749
  %v751 = vsel %vm750, %v742, %v747
  %v752 = vrsqrt.pop %v741
  %v753 = vmul.f32 %v752, %v741
  %v754 = vmul.f32 %v753, %v752
  %v755 = vmul.f32 0.5, %v754
  %v756 = vsub.f32 1.5, %v755
  %v757 = vmul.f32 %v752, %v756
  %vm758 = vweird.f32 %v741
  %vm759 = vweird.f32 %v752
  %vm760 = vmor %vm758, %vm759
  %v761 = vsel %vm760, %v752, %v757
  %v762 = vmul.f32 %v728, %v751
  %v763 = vmul.f32 %v729, %v761
  %v765 = vperm.slane %v718, 0
  %v767 = vmul.f32 %v762, %v765
  %v768 = vmul.f32 %v763, %v765
  %v770 = vperm.slane %v719, 0
  %v772 = vadd.f32 %v767, %v770
  %v773 = vadd.f32 %v768, %v770
  %s774 = scalar_lea.vmem %s4, 32
  %v775 = vld [vmem:[%s774] sm:$0xff]
  %v776 = vld [vmem:[%s774 + $0x8] sm:$0xff]
  %v777 = vld [vmem:[%s774 + $0x10] sm:$0xff]
  %v778 = vld [vmem:[%s774 + $0x18] sm:$0xff]
  %s779 = scalar_lea.vmem %s5, 1
  %v780 = vld [vmem:[%s779] sm:$0x1]
  %v782 = vperm.slane %v780, 0
  %v785 = vsel %vm69, %v772, 0
  %v788 = vsel %vm69, %v773, 0
  %790 = vmatpush.msra.mxu0 0.0
  %791 = vmatpush.msra.mxu0 0.0
  %792 = vmatpush.msra.mxu0 0.0
  %793 = vmatpush.msra.mxu0 0.0
  %794 = vmatpush.msra.mxu0 0.0
  %795 = vmatpush.msra.mxu0 0.0
  %796 = vmatpush.msra.mxu0 0.0
  %797 = vmatpush.msra.mxu0 0.0
  %798 = vmatpush.msra.mxu0 0.0
  %799 = vmatpush.msra.mxu0 0.0
  %800 = vmatpush.msra.mxu0 0.0
  %801 = vmatpush.msra.mxu0 0.0
  %802 = vmatpush.msra.mxu0 %v778
  %803 = vmatpush.msra.mxu0 %v777
  %804 = vmatpush.msra.mxu0 %v776
  %805 = vmatpush.msra.mxu0 %v775
  %806 = vmatmul.f32.gmra.mxu0 %v785
  %v807 = vpop.f32.mrf.mxu0
  %v808 = vadd.f32 %v782, %v807
  %809 = vmatmul.f32.gmra.mxu0 %v788
  %v810 = vpop.f32.mrf.mxu0
  %v811 = vadd.f32 %v782, %v810
  %812 = vdwg.mxu0
  %814 = vrot.lane.b32.xlu0 %v808, 96
  %v815 = vpop.permute.xlu0 %814
  %v816 = vsel %vm172, %v808, 0
  %v818 = vsel %vm172, %v815, 0
  %820 = vmatpush.xpose.msra.mxu0 0.0
  %821 = vmatpush.xpose.msra.mxu0 0.0
  %822 = vmatpush.xpose.msra.mxu0 0.0
  %823 = vmatpush.xpose.msra.mxu0 0.0
  %824 = vmatpush.xpose.msra.mxu0 0.0
  %825 = vmatpush.xpose.msra.mxu0 0.0
  %826 = vmatpush.xpose.msra.mxu0 0.0
  %827 = vmatpush.xpose.msra.mxu0 0.0
  %828 = vmatpush.xpose.msra.mxu0 0.0
  %829 = vmatpush.xpose.msra.mxu0 0.0
  %830 = vmatpush.xpose.msra.mxu0 0.0
  %831 = vmatpush.xpose.msra.mxu0 0.0
  %832 = vmatpush.xpose.msra.mxu0 0.0
  %833 = vmatpush.xpose.msra.mxu0 0.0
  %834 = vmatpush.xpose.msra.mxu0 0.0
  %835 = vmatpush.xpose.msra.mxu0 %v818
  %836 = vmatmul.f32.gmra.mxu0 %v816
  %v837 = vpop.f32.mrf.mxu0
  %v838 = vadd.f32 0.0, %v837
  %839 = vdwg.mxu0
  %v840 = vmul.f32 %v838, 0.25
  %v841 = vadd.f32 %v840, %v198
  %v842 = vsel %vm200, %v841, -inf
  %843 = vmax.xlane.f32.xlu0 %v842
  %v844 = vpop.xlane.xlu0 %843
  %v845 = vsub.f32 %v841, %v844
  %v846 = vmul.f32 %v845, 1.442695
  %v847 = vpow.pop %v846
  %v848 = vsel %vm200, %v847, 0.0
  %849 = vadd.xlane.f32.xlu0 %v848
  %v850 = vpop.xlane.xlu0 %849
  %v851 = vrcp.pop %v850
  %v852 = vmul.f32 %v847, %v851
  %853 = vrot.lane.b32.xlu0 %v808, 64
  %v854 = vpop.permute.xlu0 %853
  %v857 = vsel %vm200, %v852, 0
  %859 = vmatpush.msra.mxu0 0.0
  %860 = vmatpush.msra.mxu0 0.0
  %861 = vmatpush.msra.mxu0 0.0
  %862 = vmatpush.msra.mxu0 0.0
  %863 = vmatpush.msra.mxu0 0.0
  %864 = vmatpush.msra.mxu0 0.0
  %865 = vmatpush.msra.mxu0 0.0
  %866 = vmatpush.msra.mxu0 0.0
  %867 = vmatpush.msra.mxu0 0.0
  %868 = vmatpush.msra.mxu0 0.0
  %869 = vmatpush.msra.mxu0 0.0
  %870 = vmatpush.msra.mxu0 0.0
  %871 = vmatpush.msra.mxu0 0.0
  %872 = vmatpush.msra.mxu0 0.0
  %873 = vmatpush.msra.mxu0 0.0
  %874 = vmatpush.msra.mxu0 %v854
  %875 = vmatmul.f32.gmra.mxu0 %v857
  %v876 = vpop.f32.mrf.mxu0
  %v877 = vadd.f32 0.0, %v876
  %878 = vdwg.mxu0
  %879 = vst.msk [vmem:[#allocation2] sm:$0xff] %vm172, %v877
  %880 = vrot.lane.b32.xlu0 %v808, 112
  %v881 = vpop.permute.xlu0 %880
  %882 = vrot.lane.b32.xlu0 %v808, 80
  %v883 = vpop.permute.xlu0 %882
  %v884 = vsel %vm172, %v881, 0
  %v886 = vsel %vm172, %v883, 0
  %888 = vmatpush.xpose.msra.mxu0 0.0
  %889 = vmatpush.xpose.msra.mxu0 0.0
  %890 = vmatpush.xpose.msra.mxu0 0.0
  %891 = vmatpush.xpose.msra.mxu0 0.0
  %892 = vmatpush.xpose.msra.mxu0 0.0
  %893 = vmatpush.xpose.msra.mxu0 0.0
  %894 = vmatpush.xpose.msra.mxu0 0.0
  %895 = vmatpush.xpose.msra.mxu0 0.0
  %896 = vmatpush.xpose.msra.mxu0 0.0
  %897 = vmatpush.xpose.msra.mxu0 0.0
  %898 = vmatpush.xpose.msra.mxu0 0.0
  %899 = vmatpush.xpose.msra.mxu0 0.0
  %900 = vmatpush.xpose.msra.mxu0 0.0
  %901 = vmatpush.xpose.msra.mxu0 0.0
  %902 = vmatpush.xpose.msra.mxu0 0.0
  %903 = vmatpush.xpose.msra.mxu0 %v886
  %904 = vmatmul.f32.gmra.mxu0 %v884
  %v905 = vpop.f32.mrf.mxu0
  %v906 = vadd.f32 0.0, %v905
  %907 = vdwg.mxu0
  %v908 = vmul.f32 %v906, 0.25
  %v909 = vadd.f32 %v908, %v198
  %v910 = vsel %vm200, %v909, -inf
  %911 = vmax.xlane.f32.xlu0 %v910
  %v912 = vpop.xlane.xlu0 %911
  %v913 = vsub.f32 %v909, %v912
  %v914 = vmul.f32 %v913, 1.442695
  %v915 = vpow.pop %v914
  %v916 = vsel %vm200, %v915, 0.0
  %917 = vadd.xlane.f32.xlu0 %v916
  %v918 = vpop.xlane.xlu0 %917
  %v919 = vrcp.pop %v918
  %v920 = vmul.f32 %v915, %v919
  %921 = vrot.lane.b32.xlu0 %v808, 48
  %v922 = vpop.permute.xlu0 %921
  %v925 = vsel %vm200, %v920, 0
  %927 = vmatpush.msra.mxu0 0.0
  %928 = vmatpush.msra.mxu0 0.0
  %929 = vmatpush.msra.mxu0 0.0
  %930 = vmatpush.msra.mxu0 0.0
  %931 = vmatpush.msra.mxu0 0.0
  %932 = vmatpush.msra.mxu0 0.0
  %933 = vmatpush.msra.mxu0 0.0
  %934 = vmatpush.msra.mxu0 0.0
  %935 = vmatpush.msra.mxu0 0.0
  %936 = vmatpush.msra.mxu0 0.0
  %937 = vmatpush.msra.mxu0 0.0
  %938 = vmatpush.msra.mxu0 0.0
  %939 = vmatpush.msra.mxu0 0.0
  %940 = vmatpush.msra.mxu0 0.0
  %941 = vmatpush.msra.mxu0 0.0
  %942 = vmatpush.msra.mxu0 %v922
  %943 = vmatmul.f32.gmra.mxu0 %v925
  %v944 = vpop.f32.mrf.mxu0
  %v945 = vadd.f32 0.0, %v944
  %946 = vdwg.mxu0
  %948 = vrot.lane.b32.xlu0 %v945, 16
  %v949 = vpop.permute.xlu0 %948
  %951 = vst.msk [vmem:[#allocation2] sm:$0xff] %vm310, %v949
  %953 = vrot.lane.b32.xlu0 %v811, 96
  %v954 = vpop.permute.xlu0 %953
  %v955 = vsel %vm172, %v811, 0
  %v957 = vsel %vm172, %v954, 0
  %959 = vmatpush.xpose.msra.mxu0 0.0
  %960 = vmatpush.xpose.msra.mxu0 0.0
  %961 = vmatpush.xpose.msra.mxu0 0.0
  %962 = vmatpush.xpose.msra.mxu0 0.0
  %963 = vmatpush.xpose.msra.mxu0 0.0
  %964 = vmatpush.xpose.msra.mxu0 0.0
  %965 = vmatpush.xpose.msra.mxu0 0.0
  %966 = vmatpush.xpose.msra.mxu0 0.0
  %967 = vmatpush.xpose.msra.mxu0 0.0
  %968 = vmatpush.xpose.msra.mxu0 0.0
  %969 = vmatpush.xpose.msra.mxu0 0.0
  %970 = vmatpush.xpose.msra.mxu0 0.0
  %971 = vmatpush.xpose.msra.mxu0 0.0
  %972 = vmatpush.xpose.msra.mxu0 0.0
  %973 = vmatpush.xpose.msra.mxu0 0.0
  %974 = vmatpush.xpose.msra.mxu0 %v957
  %975 = vmatmul.f32.gmra.mxu0 %v955
  %v976 = vpop.f32.mrf.mxu0
  %v977 = vadd.f32 0.0, %v976
  %978 = vdwg.mxu0
  %v979 = vmul.f32 %v977, 0.25
  %v980 = vadd.f32 %v979, %v340
  %v981 = vsel %vm200, %v980, -inf
  %982 = vmax.xlane.f32.xlu0 %v981
  %v983 = vpop.xlane.xlu0 %982
  %v984 = vsub.f32 %v980, %v983
  %v985 = vmul.f32 %v984, 1.442695
  %v986 = vpow.pop %v985
  %v987 = vsel %vm200, %v986, 0.0
  %988 = vadd.xlane.f32.xlu0 %v987
  %v989 = vpop.xlane.xlu0 %988
  %v990 = vrcp.pop %v989
  %v991 = vmul.f32 %v986, %v990
  %992 = vrot.lane.b32.xlu0 %v811, 64
  %v993 = vpop.permute.xlu0 %992
  %v996 = vsel %vm200, %v991, 0
  %998 = vmatpush.msra.mxu0 0.0
  %999 = vmatpush.msra.mxu0 0.0
  %1000 = vmatpush.msra.mxu0 0.0
  %1001 = vmatpush.msra.mxu0 0.0
  %1002 = vmatpush.msra.mxu0 0.0
  %1003 = vmatpush.msra.mxu0 0.0
  %1004 = vmatpush.msra.mxu0 0.0
  %1005 = vmatpush.msra.mxu0 0.0
  %1006 = vmatpush.msra.mxu0 0.0
  %1007 = vmatpush.msra.mxu0 0.0
  %1008 = vmatpush.msra.mxu0 0.0
  %1009 = vmatpush.msra.mxu0 0.0
  %1010 = vmatpush.msra.mxu0 0.0
  %1011 = vmatpush.msra.mxu0 0.0
  %1012 = vmatpush.msra.mxu0 0.0
  %1013 = vmatpush.msra.mxu0 %v993
  %1014 = vmatmul.f32.gmra.mxu0 %v996
  %v1015 = vpop.f32.mrf.mxu0
  %v1016 = vadd.f32 0.0, %v1015
  %1017 = vdwg.mxu0
  %1018 = vst.msk [vmem:[#allocation2 + $0x8] sm:$0xff] %vm172, %v1016
  %1019 = vrot.lane.b32.xlu0 %v811, 112
  %v1020 = vpop.permute.xlu0 %1019
  %1021 = vrot.lane.b32.xlu0 %v811, 80
  %v1022 = vpop.permute.xlu0 %1021
  %v1023 = vsel %vm172, %v1020, 0
  %v1025 = vsel %vm172, %v1022, 0
  %1027 = vmatpush.xpose.msra.mxu0 0.0
  %1028 = vmatpush.xpose.msra.mxu0 0.0
  %1029 = vmatpush.xpose.msra.mxu0 0.0
  %1030 = vmatpush.xpose.msra.mxu0 0.0
  %1031 = vmatpush.xpose.msra.mxu0 0.0
  %1032 = vmatpush.xpose.msra.mxu0 0.0
  %1033 = vmatpush.xpose.msra.mxu0 0.0
  %1034 = vmatpush.xpose.msra.mxu0 0.0
  %1035 = vmatpush.xpose.msra.mxu0 0.0
  %1036 = vmatpush.xpose.msra.mxu0 0.0
  %1037 = vmatpush.xpose.msra.mxu0 0.0
  %1038 = vmatpush.xpose.msra.mxu0 0.0
  %1039 = vmatpush.xpose.msra.mxu0 0.0
  %1040 = vmatpush.xpose.msra.mxu0 0.0
  %1041 = vmatpush.xpose.msra.mxu0 0.0
  %1042 = vmatpush.xpose.msra.mxu0 %v1025
  %1043 = vmatmul.f32.gmra.mxu0 %v1023
  %v1044 = vpop.f32.mrf.mxu0
  %v1045 = vadd.f32 0.0, %v1044
  %1046 = vdwg.mxu0
  %v1047 = vmul.f32 %v1045, 0.25
  %v1048 = vadd.f32 %v1047, %v340
  %v1049 = vsel %vm200, %v1048, -inf
  %1050 = vmax.xlane.f32.xlu0 %v1049
  %v1051 = vpop.xlane.xlu0 %1050
  %v1052 = vsub.f32 %v1048, %v1051
  %v1053 = vmul.f32 %v1052, 1.442695
  %v1054 = vpow.pop %v1053
  %v1055 = vsel %vm200, %v1054, 0.0
  %1056 = vadd.xlane.f32.xlu0 %v1055
  %v1057 = vpop.xlane.xlu0 %1056
  %v1058 = vrcp.pop %v1057
  %v1059 = vmul.f32 %v1054, %v1058
  %1060 = vrot.lane.b32.xlu0 %v811, 48
  %v1061 = vpop.permute.xlu0 %1060
  %v1064 = vsel %vm200, %v1059, 0
  %1066 = vmatpush.msra.mxu0 0.0
  %1067 = vmatpush.msra.mxu0 0.0
  %1068 = vmatpush.msra.mxu0 0.0
  %1069 = vmatpush.msra.mxu0 0.0
  %1070 = vmatpush.msra.mxu0 0.0
  %1071 = vmatpush.msra.mxu0 0.0
  %1072 = vmatpush.msra.mxu0 0.0
  %1073 = vmatpush.msra.mxu0 0.0
  %1074 = vmatpush.msra.mxu0 0.0
  %1075 = vmatpush.msra.mxu0 0.0
  %1076 = vmatpush.msra.mxu0 0.0
  %1077 = vmatpush.msra.mxu0 0.0
  %1078 = vmatpush.msra.mxu0 0.0
  %1079 = vmatpush.msra.mxu0 0.0
  %1080 = vmatpush.msra.mxu0 0.0
  %1081 = vmatpush.msra.mxu0 %v1061
  %1082 = vmatmul.f32.gmra.mxu0 %v1064
  %v1083 = vpop.f32.mrf.mxu0
  %v1084 = vadd.f32 0.0, %v1083
  %1085 = vdwg.mxu0
  %1087 = vrot.lane.b32.xlu0 %v1084, 16
  %v1088 = vpop.permute.xlu0 %1087
  %1090 = vst.msk [vmem:[#allocation2 + $0x8] sm:$0xff] %vm310, %v1088
  %v1091 = vld [vmem:[#allocation2] sm:$0xff]
  %v1092 = vld [vmem:[#allocation2 + $0x8] sm:$0xff]
  %s1093 = scalar_lea.vmem %s6, 32
  %v1094 = vld [vmem:[%s1093] sm:$0xff]
  %v1095 = vld [vmem:[%s1093 + $0x8] sm:$0xff]
  %v1096 = vld [vmem:[%s1093 + $0x10] sm:$0xff]
  %v1097 = vld [vmem:[%s1093 + $0x18] sm:$0xff]
  %s1098 = scalar_lea.vmem %s7, 1
  %v1099 = vld [vmem:[%s1098] sm:$0x1]
  %v1101 = vperm.slane %v1099, 0
  %v1104 = vsel %vm69, %v1091, 0
  %v1107 = vsel %vm69, %v1092, 0
  %1109 = vmatpush.msra.mxu0 0.0
  %1110 = vmatpush.msra.mxu0 0.0
  %1111 = vmatpush.msra.mxu0 0.0
  %1112 = vmatpush.msra.mxu0 0.0
  %1113 = vmatpush.msra.mxu0 0.0
  %1114 = vmatpush.msra.mxu0 0.0
  %1115 = vmatpush.msra.mxu0 0.0
  %1116 = vmatpush.msra.mxu0 0.0
  %1117 = vmatpush.msra.mxu0 0.0
  %1118 = vmatpush.msra.mxu0 0.0
  %1119 = vmatpush.msra.mxu0 0.0
  %1120 = vmatpush.msra.mxu0 0.0
  %1121 = vmatpush.msra.mxu0 %v1097
  %1122 = vmatpush.msra.mxu0 %v1096
  %1123 = vmatpush.msra.mxu0 %v1095
  %1124 = vmatpush.msra.mxu0 %v1094
  %1125 = vmatmul.f32.gmra.mxu0 %v1104
  %v1126 = vpop.f32.mrf.mxu0
  %v1127 = vadd.f32 %v1101, %v1126
  %1128 = vmatmul.f32.gmra.mxu0 %v1107
  %v1129 = vpop.f32.mrf.mxu0
  %v1130 = vadd.f32 %v1101, %v1129
  %1131 = vdwg.mxu0
  %v1132 = vadd.f32 %v772, %v1127
  %v1133 = vadd.f32 %v773, %v1130
  %s1134 = scalar_lea.vmem %s8, 1
  %v1135 = vld [vmem:[%s1134] sm:$0x1]
  %s1136 = scalar_lea.vmem %s9, 1
  %v1137 = vld [vmem:[%s1136] sm:$0x1]
  %v1138 = vsel %vm69, %v1132, 0.0
  %1139 = vadd.xlane.f32.xlu0 %v1138
  %v1140 = vpop.xlane.xlu0 %1139
  %v1141 = vsel %vm69, %v1133, 0.0
  %1142 = vadd.xlane.f32.xlu0 %v1141
  %v1143 = vpop.xlane.xlu0 %1142
  %v1144 = vmul.f32 %v1140, %v82
  %v1145 = vmul.f32 %v1143, %v82
  %v1146 = vsub.f32 %v1132, %v1144
  %v1147 = vsub.f32 %v1133, %v1145
  %v1148 = vmul.f32 %v1146, %v1146
  %v1149 = vmul.f32 %v1147, %v1147
  %v1150 = vsel %vm69, %v1148, 0.0
  %1151 = vadd.xlane.f32.xlu0 %v1150
  %v1152 = vpop.xlane.xlu0 %1151
  %v1153 = vsel %vm69, %v1149, 0.0
  %1154 = vadd.xlane.f32.xlu0 %v1153
  %v1155 = vpop.xlane.xlu0 %1154
  %v1156 = vmul.f32 %v1152, %v82
  %v1157 = vmul.f32 %v1155, %v82
  %v1158 = vadd.f32 %v1156, 1e-12
  %v1159 = vadd.f32 %v1157, 1e-12
  %v1160 = vrsqrt.pop %v1158
  %v1161 = vmul.f32 %v1160, %v1158
  %v1162 = vmul.f32 %v1161, %v1160
  %v1163 = vmul.f32 0.5, %v1162
  %v1164 = vsub.f32 1.5, %v1163
  %v1165 = vmul.f32 %v1160, %v1164
  %vm1166 = vweird.f32 %v1158
  %vm1167 = vweird.f32 %v1160
  %vm1168 = vmor %vm1166, %vm1167
  %v1169 = vsel %vm1168, %v1160, %v1165
  %v1170 = vrsqrt.pop %v1159
  %v1171 = vmul.f32 %v1170, %v1159
  %v1172 = vmul.f32 %v1171, %v1170
  %v1173 = vmul.f32 0.5, %v1172
  %v1174 = vsub.f32 1.5, %v1173
  %v1175 = vmul.f32 %v1170, %v1174
  %vm1176 = vweird.f32 %v1159
  %vm1177 = vweird.f32 %v1170
  %vm1178 = vmor %vm1176, %vm1177
  %v1179 = vsel %vm1178, %v1170, %v1175
  %v1180 = vmul.f32 %v1146, %v1169
  %v1181 = vmul.f32 %v1147, %v1179
  %v1183 = vperm.slane %v1135, 0
  %v1185 = vmul.f32 %v1180, %v1183
  %v1186 = vmul.f32 %v1181, %v1183
  %v1188 = vperm.slane %v1137, 0
  %v1190 = vadd.f32 %v1185, %v1188
  %v1191 = vadd.f32 %v1186, %v1188
  %s1192 = scalar_lea.vmem %s10, 32
  %v1193 = vld [vmem:[%s1192] sm:$0xff]
  %v1194 = vld [vmem:[%s1192 + $0x8] sm:$0xff]
  %v1195 = vld [vmem:[%s1192 + $0x10] sm:$0xff]
  %v1196 = vld [vmem:[%s1192 + $0x18] sm:$0xff]
  %s1197 = scalar_lea.vmem %s11, 1
  %v1198 = vld [vmem:[%s1197] sm:$0x1]
  %v1200 = vperm.slane %v1198, 0
  %v1203 = vsel %vm69, %v1190, 0
  %v1206 = vsel %vm69, %v1191, 0
  %1208 = vmatpush.msra.mxu0 0.0
  %1209 = vmatpush.msra.mxu0 0.0
  %1210 = vmatpush.msra.mxu0 0.0
  %1211 = vmatpush.msra.mxu0 0.0
  %1212 = vmatpush.msra.mxu0 0.0
  %1213 = vmatpush.msra.mxu0 0.0
  %1214 = vmatpush.msra.mxu0 0.0
  %1215 = vmatpush.msra.mxu0 0.0
  %1216 = vmatpush.msra.mxu0 0.0
  %1217 = vmatpush.msra.mxu0 0.0
  %1218 = vmatpush.msra.mxu0 0.0
  %1219 = vmatpush.msra.mxu0 0.0
  %1220 = vmatpush.msra.mxu0 %v1196
  %1221 = vmatpush.msra.mxu0 %v1195
  %1222 = vmatpush.msra.mxu0 %v1194
  %1223 = vmatpush.msra.mxu0 %v1193
  %1224 = vmatmul.f32.gmra.mxu0 %v1203
  %v1225 = vpop.f32.mrf.mxu0
  %v1226 = vadd.f32 %v1200, %v1225
  %1227 = vmatmul.f32.gmra.mxu0 %v1206
  %v1228 = vpop.f32.mrf.mxu0
  %v1229 = vadd.f32 %v1200, %v1228
  %1230 = vdwg.mxu0
  %v1231 = vmul.f32 %v1226, 0.5
  %v1232 = vmul.f32 %v1229, 0.5
  %v1233 = vmul.f32 %v1226, 0.70710677
  %v1234 = vmul.f32 %v1229, 0.70710677
  %v1235 = vmul.f32 %v1233, %v1233
  %v1236 = vmin.f32 16.0, %v1235
  %v1237 = vmul.f32 %v1236, 2.1237322e-06
  %v1238 = vadd.f32 %v1237, 0.00028619796
  %v1239 = vmul.f32 %v1236, %v1238
  %v1240 = vadd.f32 %v1239, 0.0036580483
  %v1241 = vmul.f32 %v1236, %v1240
  %v1242 = vadd.f32 %v1241, 0.05243302
  %v1243 = vmul.f32 %v1236, %v1242
  %v1244 = vadd.f32 %v1243, 0.18741608
  %v1245 = vmul.f32 %v1236, %v1244
  %v1246 = vadd.f32 %v1245, 1.1283791
  %v1247 = vmul.f32 %v1233, %v1246
  %v1248 = vmul.f32 %v1236, 3.8918573e-05
  %v1249 = vadd.f32 %v1248, 0.001143296
  %v1250 = vmul.f32 %v1236, %v1249
  %v1251 = vadd.f32 %v1250, 0.014752088
  %v1252 = vmul.f32 %v1236, %v1251
  %v1253 = vadd.f32 %v1252, 0.112945676
  %v1254 = vmul.f32 %v1236, %v1253
  %v1255 = vadd.f32 %v1254, 0.4994258
  %v1256 = vmul.f32 %v1236, %v1255
  %v1257 = vadd.f32 %v1256, 1.0
  %v1258 = vrcp.pop %v1257
  %v1259 = vmul.f32 %v1257, %v1258
  %v1260 = vsub.f32 1.0, %v1259
  %v1261 = vmul.f32 %v1258, %v1260
  %v1262 = vadd.f32 %v1258, %v1261
  %vm1263 = vweird.f32 %v1257
  %vm1264 = vweird.f32 %v1258
  %vm1265 = vmor %vm1263, %vm1264
  %v1266 = vsel %vm1265, %v1258, %v1262
  %v1267 = vand.u32 2147483647, %v1257
  %vm1268 = vcmp.eq.f32.partialorder %v1267, 8.507059e+37
  %v1269 = vand.u32 %v1257, 2147483648
  %v1270 = vor.u32 1.1754944e-38, %v1269
  %v1271 = vsel %vm1268, %v1270, %v1266
  %v1272 = vmul.f32 %v1247, %v1271
  %v1273 = vmin.f32 %v1272, 1.0
  %v1274 = vmax.f32 %v1273, -1.0
  %v1275 = vmul.f32 %v1234, %v1234
  %v1276 = vmin.f32 16.0, %v1275
  %v1277 = vmul.f32 %v1276, 2.1237322e-06
  %v1278 = vadd.f32 %v1277, 0.00028619796
  %v1279 = vmul.f32 %v1276, %v1278
  %v1280 = vadd.f32 %v1279, 0.0036580483
  %v1281 = vmul.f32 %v1276, %v1280
  %v1282 = vadd.f32 %v1281, 0.05243302
  %v1283 = vmul.f32 %v1276, %v1282
  %v1284 = vadd.f32 %v1283, 0.18741608
  %v1285 = vmul.f32 %v1276, %v1284
  %v1286 = vadd.f32 %v1285, 1.1283791
  %v1287 = vmul.f32 %v1234, %v1286
  %v1288 = vmul.f32 %v1276, 3.8918573e-05
  %v1289 = vadd.f32 %v1288, 0.001143296
  %v1290 = vmul.f32 %v1276, %v1289
  %v1291 = vadd.f32 %v1290, 0.014752088
  %v1292 = vmul.f32 %v1276, %v1291
  %v1293 = vadd.f32 %v1292, 0.112945676
  %v1294 = vmul.f32 %v1276, %v1293
  %v1295 = vadd.f32 %v1294, 0.4994258
  %v1296 = vmul.f32 %v1276, %v1295
  %v1297 = vadd.f32 %v1296, 1.0
  %v1298 = vrcp.pop %v1297
  %v1299 = vmul.f32 %v1297, %v1298
  %v1300 = vsub.f32 1.0, %v1299
  %v1301 = vmul.f32 %v1298, %v1300
  %v1302 = vadd.f32 %v1298, %v1301
  %vm1303 = vweird.f32 %v1297
  %vm1304 = vweird.f32 %v1298
  %vm1305 = vmor %vm1303, %vm1304
  %v1306 = vsel %vm1305, %v1298, %v1302
  %v1307 = vand.u32 2147483647, %v1297
  %vm1308 = vcmp.eq.f32.partialorder %v1307, 8.507059e+37
  %v1309 = vand.u32 %v1297, 2147483648
  %v1310 = vor.u32 1.1754944e-38, %v1309
  %v1311 = vsel %vm1308, %v1310, %v1306
  %v1312 = vmul.f32 %v1287, %v1311
  %v1313 = vmin.f32 %v1312, 1.0
  %v1314 = vmax.f32 %v1313, -1.0
  %v1315 = vadd.f32 %v1274, 1.0
  %v1316 = vadd.f32 %v1314, 1.0
  %v1317 = vmul.f32 %v1231, %v1315
  %v1318 = vmul.f32 %v1232, %v1316
  %s1319 = scalar_lea.vmem %s12, 64
  %v1320 = vld [vmem:[%s1319] sm:$0xff]
  %v1321 = vld [vmem:[%s1319 + $0x8] sm:$0xff]
  %v1322 = vld [vmem:[%s1319 + $0x10] sm:$0xff]
  %v1323 = vld [vmem:[%s1319 + $0x18] sm:$0xff]
  %v1324 = vld [vmem:[%s1319 + $0x20] sm:$0xff]
  %v1325 = vld [vmem:[%s1319 + $0x28] sm:$0xff]
  %v1326 = vld [vmem:[%s1319 + $0x30] sm:$0xff]
  %v1327 = vld [vmem:[%s1319 + $0x38] sm:$0xff]
  %s1328 = scalar_lea.vmem %s13, 1
  %v1329 = vld [vmem:[%s1328] sm:$0x1]
  %v1331 = vperm.slane %v1329, 0
  %v1334 = vsel %vm686, %v1317, 0
  %v1337 = vsel %vm686, %v1318, 0
  %1339 = vmatpush.msra.mxu0 0.0
  %1340 = vmatpush.msra.mxu0 0.0
  %1341 = vmatpush.msra.mxu0 0.0
  %1342 = vmatpush.msra.mxu0 0.0
  %1343 = vmatpush.msra.mxu0 0.0
  %1344 = vmatpush.msra.mxu0 0.0
  %1345 = vmatpush.msra.mxu0 0.0
  %1346 = vmatpush.msra.mxu0 0.0
  %1347 = vmatpush.msra.mxu0 %v1327
  %1348 = vmatpush.msra.mxu0 %v1326
  %1349 = vmatpush.msra.mxu0 %v1325
  %1350 = vmatpush.msra.mxu0 %v1324
  %1351 = vmatpush.msra.mxu0 %v1323
  %1352 = vmatpush.msra.mxu0 %v1322
  %1353 = vmatpush.msra.mxu0 %v1321
  %1354 = vmatpush.msra.mxu0 %v1320
  %1355 = vmatmul.f32.gmra.mxu0 %v1334
  %v1356 = vpop.f32.mrf.mxu0
  %v1357 = vadd.f32 %v1331, %v1356
  %1358 = vmatmul.f32.gmra.mxu0 %v1337
  %v1359 = vpop.f32.mrf.mxu0
  %v1360 = vadd.f32 %v1331, %v1359
  %1361 = vdwg.mxu0
  %v1362 = vadd.f32 %v1190, %v1357
  %v1363 = vadd.f32 %v1191, %v1360
  %s1364 = scalar_lea.vmem %s14, 1
  %v1365 = vld [vmem:[%s1364] sm:$0x1]
  %s1366 = scalar_lea.vmem %s15, 1
  %v1367 = vld [vmem:[%s1366] sm:$0x1]
  %v1368 = vsel %vm69, %v1362, 0.0
  %1369 = vadd.xlane.f32.xlu0 %v1368
  %v1370 = vpop.xlane.xlu0 %1369
  %v1371 = vsel %vm69, %v1363, 0.0
  %1372 = vadd.xlane.f32.xlu0 %v1371
  %v1373 = vpop.xlane.xlu0 %1372
  %v1374 = vmul.f32 %v1370, %v82
  %v1375 = vmul.f32 %v1373, %v82
  %v1376 = vsub.f32 %v1362, %v1374
  %v1377 = vsub.f32 %v1363, %v1375
  %v1378 = vmul.f32 %v1376, %v1376
  %v1379 = vmul.f32 %v1377, %v1377
  %v1380 = vsel %vm69, %v1378, 0.0
  %1381 = vadd.xlane.f32.xlu0 %v1380
  %v1382 = vpop.xlane.xlu0 %1381
  %v1383 = vsel %vm69, %v1379, 0.0
  %1384 = vadd.xlane.f32.xlu0 %v1383
  %v1385 = vpop.xlane.xlu0 %1384
  %v1386 = vmul.f32 %v1382, %v82
  %v1387 = vmul.f32 %v1385, %v82
  %v1388 = vadd.f32 %v1386, 1e-12
  %v1389 = vadd.f32 %v1387, 1e-12
  %v1390 = vrsqrt.pop %v1388
  %v1391 = vmul.f32 %v1390, %v1388
  %v1392 = vmul.f32 %v1391, %v1390
  %v1393 = vmul.f32 0.5, %v1392
  %v1394 = vsub.f32 1.5, %v1393
  %v1395 = vmul.f32 %v1390, %v1394
  %vm1396 = vweird.f32 %v1388
  %vm1397 = vweird.f32 %v1390
  %vm1398 = vmor %vm1396, %vm1397
  %v1399 = vsel %vm1398, %v1390, %v1395
  %v1400 = vrsqrt.pop %v1389
  %v1401 = vmul.f32 %v1400, %v1389
  %v1402 = vmul.f32 %v1401, %v1400
  %v1403 = vmul.f32 0.5, %v1402
  %v1404 = vsub.f32 1.5, %v1403
  %v1405 = vmul.f32 %v1400, %v1404
  %vm1406 = vweird.f32 %v1389
  %vm1407 = vweird.f32 %v1400
  %vm1408 = vmor %vm1406, %vm1407
  %v1409 = vsel %vm1408, %v1400, %v1405
  %v1410 = vmul.f32 %v1376, %v1399
  %v1411 = vmul.f32 %v1377, %v1409
  %v1413 = vperm.slane %v1365, 0
  %v1415 = vmul.f32 %v1410, %v1413
  %v1416 = vmul.f32 %v1411, %v1413
  %v1418 = vperm.slane %v1367, 0
  %v1420 = vadd.f32 %v1415, %v1418
  %v1421 = vadd.f32 %v1416, %v1418
  %v1422 = vld [vmem:[%s16] sm:$0xff]
  %v1423 = vld [vmem:[%s16 + $0x8] sm:$0xff]
  %v1424 = vld [vmem:[%s16 + $0x10] sm:$0xff]
  %v1425 = vld [vmem:[%s16 + $0x18] sm:$0xff]
  %v1426 = vld [vmem:[%s17] sm:$0x1]
  %v1428 = vperm.slane %v1426, 0
  %v1431 = vsel %vm69, %v1420, 0
  %v1434 = vsel %vm69, %v1421, 0
  %1436 = vmatpush.msra.mxu0 0.0
  %1437 = vmatpush.msra.mxu0 0.0
  %1438 = vmatpush.msra.mxu0 0.0
  %1439 = vmatpush.msra.mxu0 0.0
  %1440 = vmatpush.msra.mxu0 0.0
  %1441 = vmatpush.msra.mxu0 0.0
  %1442 = vmatpush.msra.mxu0 0.0
  %1443 = vmatpush.msra.mxu0 0.0
  %1444 = vmatpush.msra.mxu0 0.0
  %1445 = vmatpush.msra.mxu0 0.0
  %1446 = vmatpush.msra.mxu0 0.0
  %1447 = vmatpush.msra.mxu0 0.0
  %1448 = vmatpush.msra.mxu0 %v1425
  %1449 = vmatpush.msra.mxu0 %v1424
  %1450 = vmatpush.msra.mxu0 %v1423
  %1451 = vmatpush.msra.mxu0 %v1422
  %1452 = vmatmul.f32.gmra.mxu0 %v1431
  %v1453 = vpop.f32.mrf.mxu0
  %v1454 = vadd.f32 %v1428, %v1453
  %1455 = vmatmul.f32.gmra.mxu0 %v1434
  %v1456 = vpop.f32.mrf.mxu0
  %v1457 = vadd.f32 %v1428, %v1456
  %1458 = vdwg.mxu0
  %v1459 = vtanh.pop %v1454
  %v1460 = vtanh.pop %v1457
  %v1461 = vld [vmem:[%s18] sm:$0xff]
  %v1462 = vld [vmem:[%s18 + $0x8] sm:$0xff]
  %v1463 = vld [vmem:[%s18 + $0x10] sm:$0xff]
  %v1464 = vld [vmem:[%s18 + $0x18] sm:$0xff]
  %v1465 = vld [vmem:[%s19] sm:$0x1]
  %v1467 = vperm.slane %v1465, 0
  %v1470 = vsel %vm69, %v1459, 0
  %v1473 = vsel %vm69, %v1460, 0
  %1475 = vmatpush.msra.mxu0 0.0
  %1476 = vmatpush.msra.mxu0 0.0
  %1477 = vmatpush.msra.mxu0 0.0
  %1478 = vmatpush.msra.mxu0 0.0
  %1479 = vmatpush.msra.mxu0 0.0
  %1480 = vmatpush.msra.mxu0 0.0
  %1481 = vmatpush.msra.mxu0 0.0
  %1482 = vmatpush.msra.mxu0 0.0
  %1483 = vmatpush.msra.mxu0 0.0
  %1484 = vmatpush.msra.mxu0 0.0
  %1485 = vmatpush.msra.mxu0 0.0
  %1486 = vmatpush.msra.mxu0 0.0
  %1487 = vmatpush.msra.mxu0 %v1464
  %1488 = vmatpush.msra.mxu0 %v1463
  %1489 = vmatpush.msra.mxu0 %v1462
  %1490 = vmatpush.msra.mxu0 %v1461
  %1491 = vmatmul.f32.gmra.mxu0 %v1470
  %v1492 = vpop.f32.mrf.mxu0
  %v1493 = vadd.f32 %v1467, %v1492
  %1494 = vmatmul.f32.gmra.mxu0 %v1473
  %v1495 = vpop.f32.mrf.mxu0
  %v1496 = vadd.f32 %v1467, %v1495
  %1497 = vdwg.mxu0
  %1498 = vst [vmem:[%s20] sm:$0xff] %v1493
  %1499 = vst [vmem:[%s20 + $0x8] sm:$0xff] %v1496
  // Predicated region
  $region82: #{inner_bert_classification_forward.1} parent=0 // pred_check
    _
  $region83: #{inner_bert_classification_forward.1} parent=0 // pred_check_branch
    %1501 = sbr.rel (0) target = $region85
  $region84: #{inner_bert_classification_forward.1} parent=0 // pred_region
    _
  $region85: #{inner_bert_classification_forward.1} parent=0 // pred_fallthru
    _
  // Predicated region
  $region86: #{inner_bert_classification_forward.1} parent=0 // pred_check
    _
  $region87: #{inner_bert_classification_forward.1} parent=0 // pred_check_branch
    %1503 = sbr.rel (0) target = $region89
  $region88: #{inner_bert_classification_forward.1} parent=0 // pred_region
    _
  $region89: #{inner_bert_classification_forward.1} parent=0 // pred_fallthru
    _

</llo_original>
